<compile_context>
chip_gen: v6e
topology: v6e:2x2x1
jax: 0.10.0
libtpu: 0.0.40
codegen_flags: <defaults>
</compile_context>

<pallas_src>
import jax
import jax.numpy as jnp
from jax.experimental import pallas as pl
from jax.experimental.pallas import tpu as pltpu

LANE = 128
SUBLANE = 8
TARGET_ROWS = 4096          # im2col rows per grid step (safe for v7x 64 MiB VMEM)


def _round_up(x, m):
    return ((x + m - 1) // m) * m


# ----------------------------- Pallas kernel --------------------------------
def _teacher_kernel(patches_ref, wconv_ref, bconv_ref, wfc_ref, bfc_ref, out_ref):
    # patches_ref: (bt*HW, K1)   bf16   (K1 = 9*Cin, un-padded in HBM)
    # wconv_ref  : (K1, Chp)     bf16 ; bconv_ref: (1, Chp)  f32
    # wfc_ref    : (Chp, NCp)    bf16 ; bfc_ref  : (1, NCp)  f32
    # out_ref    : (bt, NCp)     f32   (bt multiple of 8 -> unmasked store)
    bt = out_ref.shape[0]
    rows = patches_ref.shape[0]
    hw = rows // bt
    chp = wconv_ref.shape[1]

    # conv-as-matmul on the MXU (bf16 operands, f32 accumulation)
    h = jnp.dot(patches_ref[...], wconv_ref[...],
                preferred_element_type=jnp.float32)          # (bt*HW, Chp) f32
    h = jnp.maximum(h + bconv_ref[...], 0.0)                 # bias + ReLU in f32

    # global average pool per image: in-kernel sublane reduction (no pooling
    # matmul, no extra HBM operand).  Lane dim (Chp) untouched by the reshape.
    pooled = jnp.sum(h.reshape(bt, hw, chp), axis=1) * (1.0 / float(hw))

    # classifier head on the MXU
    logits = jnp.dot(pooled.astype(wfc_ref.dtype), wfc_ref[...],
                     preferred_element_type=jnp.float32) + bfc_ref[...]
    out_ref[...] = logits                                     # (bt, NCp) f32


# ------------------------------ Teacher wrapper ------------------------------
def teacher_forward_batched(x_nchw, padded_params, num_classes):
    """Synthetic teacher: conv3x3(pad=1) + ReLU + GAP + linear, one pallas_call."""
    wconv_p, bconv_p, wfc_p, bfc_p = padded_params
    B, C_in, H, W = x_nchw.shape
    HW = H * W
    K1 = 9 * C_in
    Chp = wconv_p.shape[1]
    NCp = wfc_p.shape[1]

    # --- batch tiling: sublane-aligned, capped by a per-step row budget -------
    bt_cap = max(SUBLANE, ((TARGET_ROWS // HW) // SUBLANE) * SUBLANE)
    bt = min(bt_cap, _round_up(B, SUBLANE))
    Bp = _round_up(B, bt)
    n_tiles = Bp // bt

    # --- im2col glue in plain JAX (layout plumbing, not the hot path) ---------
    # cast to bf16 FIRST so every intermediate (pad/stack/reshape) is half-width
    x = jnp.transpose(x_nchw, (0, 2, 3, 1)).astype(jnp.bfloat16)   # NCHW -> NHWC
    xp = jnp.pad(x, ((0, 0), (1, 1), (1, 1), (0, 0)))
    pats = jnp.stack(
        [xp[:, i:i + H, j:j + W, :] for i in range(3) for j in range(3)],
        axis=3,
    )                                                              # [B,H,W,9,Cin]
    patches = pats.reshape(B, HW, K1)
    if Bp != B:
        patches = jnp.pad(patches, ((0, Bp - B), (0, 0), (0, 0)))
    patches = patches.reshape(Bp * HW, K1)                         # K1 un-padded

    out = pl.pallas_call(
        _teacher_kernel,
        out_shape=jax.ShapeDtypeStruct((Bp, NCp), jnp.float32),
        grid=(n_tiles,),
        in_specs=[
            pl.BlockSpec((bt * HW, K1), lambda i: (i, 0)),     # streamed rows
            pl.BlockSpec((K1, Chp), lambda i: (0, 0)),         # grid-invariant
            pl.BlockSpec((1, Chp), lambda i: (0, 0)),
            pl.BlockSpec((Chp, NCp), lambda i: (0, 0)),
            pl.BlockSpec((1, NCp), lambda i: (0, 0)),
        ],
        out_specs=pl.BlockSpec((bt, NCp), lambda i: (i, 0)),
        compiler_params=pltpu.CompilerParams(
            dimension_semantics=("parallel",)),
    )(patches, wconv_p, bconv_p, wfc_p, bfc_p)

    return out[:B, :num_classes]


# ------------------------------ DistTeacher ----------------------------------
def dist_teacher_forward(params, ld_batch, ud_batch):
    """Mirrors DistTeacher.forward: (teacher(ld), teacher(ud)) or (None, teacher(ud)).

    Both batches are run through ONE pallas_call (concatenated along B) so the
    weights are DMA'd once and the MXU sees a single large-M matmul.
    """
    padded = params["padded"]
    nc = params["num_classes"]
    if ld_batch is not None:
        b_ld = ld_batch.shape[0]
        both = jnp.concatenate([ld_batch, ud_batch], axis=0)
        logits = teacher_forward_batched(both, padded, nc)
        return logits[:b_ld], logits[b_ld:]
    else:
        return None, teacher_forward_batched(ud_batch, padded, nc)


# ------------------------------ Param init -----------------------------------
def init_teacher_params(key, c_in=4, c_hid=32, num_classes=10):
    k1, k2, k3, k4 = jax.random.split(key, 4)
    # PyTorch conv weight layout [Cout, Cin, kh, kw]; reorder to im2col matmul
    # layout [(kh*3+kw)*Cin + ci, Cout] to match the patch ordering above.
    wconv = jax.random.normal(k1, (c_hid, c_in, 3, 3), jnp.float32) * 0.1
    wconv_mat = jnp.transpose(wconv, (2, 3, 1, 0)).reshape(9 * c_in, c_hid)
    bconv = jax.random.normal(k2, (1, c_hid), jnp.float32) * 0.01
    wfc = jax.random.normal(k3, (c_hid, num_classes), jnp.float32) * 0.1
    bfc = jax.random.normal(k4, (1, num_classes), jnp.float32) * 0.01

    # Pad only the OUTPUT dims (hidden / class) to lane width 128 for lane-dense
    # loads and unmasked stores; the im2col contraction dim K1 stays un-padded.
    chp = _round_up(c_hid, LANE)
    ncp = _round_up(num_classes, LANE)
    wconv_p = (jnp.zeros((9 * c_in, chp), jnp.float32)
               .at[:, :c_hid].set(wconv_mat).astype(jnp.bfloat16))
    bconv_p = jnp.zeros((1, chp), jnp.float32).at[:, :c_hid].set(bconv)
    wfc_p = (jnp.zeros((chp, ncp), jnp.float32)
             .at[:c_hid, :num_classes].set(wfc).astype(jnp.bfloat16))
    bfc_p = jnp.zeros((1, ncp), jnp.float32).at[:, :num_classes].set(bfc)

    return {
        "padded": (wconv_p, bconv_p, wfc_p, bfc_p),
        "raw": (wconv_mat, bconv, wfc, bfc),
        "num_classes": num_classes,
    }


# --------------------------- Plain-JAX reference ------------------------------
def teacher_reference(x_nchw, wconv_mat, bconv, wfc, bfc):
    B, C, H, W = x_nchw.shape
    x = jnp.transpose(x_nchw, (0, 2, 3, 1))
    xp = jnp.pad(x, ((0, 0), (1, 1), (1, 1), (0, 0)))
    pats = jnp.stack(
        [xp[:, i:i + H, j:j + W, :] for i in range(3) for j in range(3)], axis=3)
    patches = pats.reshape(B, H * W, 9 * C)
    h = jnp.maximum(jnp.einsum('bpk,kc->bpc', patches, wconv_mat) + bconv, 0.0)
    pooled = jnp.mean(h, axis=1)
    return pooled @ wfc + bfc


# --------------------------------- Main ---------------------------------------
if __name__ == "__main__":
    key = jax.random.PRNGKey(0)
    k_ld, k_ud, k_p = jax.random.split(key, 3)

    B, C, H, W = 2, 4, 16, 16
    ld_batch = jax.random.normal(k_ld, (B, C, H, W), jnp.float32)
    ud_batch = jax.random.normal(k_ud, (B, C, H, W), jnp.float32)
    params = init_teacher_params(k_p, c_in=C, c_hid=32, num_classes=10)

    # Case 1: both batches present -> (teacher(ld), teacher(ud))
    ld_out, ud_out = dist_teacher_forward(params, ld_batch, ud_batch)
    jax.block_until_ready((ld_out, ud_out))
    assert ld_out.shape == (B, 10) and ud_out.shape == (B, 10)

    # correctness vs f32 plain-JAX reference (bf16 MXU feed -> loose tolerance)
    ref_ld = teacher_reference(ld_batch, *params["raw"])
    ref_ud = teacher_reference(ud_batch, *params["raw"])
    assert jnp.allclose(ld_out, ref_ld, atol=5e-2, rtol=5e-2)
    assert jnp.allclose(ud_out, ref_ud, atol=5e-2, rtol=5e-2)

    # Case 2: ld_batch is None -> (None, teacher(ud))
    none_out, ud_only = dist_teacher_forward(params, None, ud_batch)
    jax.block_until_ready(ud_only)
    assert none_out is None and ud_only.shape == (B, 10)
    assert jnp.allclose(ud_only, ref_ud, atol=5e-2, rtol=5e-2)

    print("KERNEL_OK")
</pallas_src>

<mosaic_0001>
module attributes {stable_mosaic.version = 11 : i64} {
  func.func @_teacher_kernel(%arg0: i32, %arg1: memref<2048x36xbf16, #tpu.memory_space<vmem>>, %arg2: memref<36x128xbf16, #tpu.memory_space<vmem>>, %arg3: memref<1x128xf32, #tpu.memory_space<vmem>>, %arg4: memref<128x128xbf16, #tpu.memory_space<vmem>>, %arg5: memref<1x128xf32, #tpu.memory_space<vmem>>, %arg6: memref<8x128xf32, #tpu.memory_space<vmem>>) attributes {dimension_semantics = [#tpu.dimension_semantics<parallel>], iteration_bounds = array<i64: 1>, scalar_prefetch = 0 : i64, scratch_operands = 0 : i64, tpu.core_type = #tpu.core_type<tc>, window_params = [{transform_indices = @transform_0, window_bounds = array<i64: 2048, 36>}, {pipeline_mode = #tpu.pipeline_mode<synchronous>, transform_indices = @transform_1, window_bounds = array<i64: 36, 128>}, {pipeline_mode = #tpu.pipeline_mode<synchronous>, transform_indices = @transform_2, window_bounds = array<i64: 1, 128>}, {pipeline_mode = #tpu.pipeline_mode<synchronous>, transform_indices = @transform_3, window_bounds = array<i64: 128, 128>}, {pipeline_mode = #tpu.pipeline_mode<synchronous>, transform_indices = @transform_4, window_bounds = array<i64: 1, 128>}, {transform_indices = @transform_5, window_bounds = array<i64: 8, 128>}]} {
    %c0 = arith.constant 0 : index
    %c0_0 = arith.constant 0 : index
    %0 = vector.load %arg1[%c0, %c0_0] : memref<2048x36xbf16, #tpu.memory_space<vmem>>, vector<2048x36xbf16>
    %c0_1 = arith.constant 0 : index
    %c0_2 = arith.constant 0 : index
    %1 = vector.load %arg2[%c0_1, %c0_2] : memref<36x128xbf16, #tpu.memory_space<vmem>>, vector<36x128xbf16>
    %cst = arith.constant dense<0.000000e+00> : vector<2048x128xf32>
    %2 = tpu.matmul %0, %1, %cst {dimension_numbers = #tpu.dot_dimension_numbers<[1], [0], [0], [1], [0, 0, 1, 1], [], []>} : vector<2048x36xbf16>, vector<36x128xbf16>, vector<2048x128xf32> -> vector<2048x128xf32>
    %c0_3 = arith.constant 0 : index
    %c0_4 = arith.constant 0 : index
    %3 = vector.load %arg3[%c0_3, %c0_4] : memref<1x128xf32, #tpu.memory_space<vmem>>, vector<1x128xf32>
    %4 = vector.broadcast %3 : vector<1x128xf32> to vector<2048x128xf32>
    %5 = arith.addf %2, %4 : vector<2048x128xf32>
    %cst_5 = arith.constant 0.000000e+00 : f32
    %6 = vector.broadcast %cst_5 : f32 to vector<2048x128xf32>
    %7 = arith.maximumf %5, %6 : vector<2048x128xf32>
    %8 = vector.shape_cast %7 : vector<2048x128xf32> to vector<8x256x128xf32>
    %cst_6 = arith.constant dense<0.000000e+00> : vector<8x128xf32>
    %9 = vector.multi_reduction <add>, %8, %cst_6 [1] : vector<8x256x128xf32> to vector<8x128xf32>
    %cst_7 = arith.constant 3.906250e-03 : f32
    %10 = vector.broadcast %cst_7 : f32 to vector<8x128xf32>
    %11 = arith.mulf %9, %10 : vector<8x128xf32>
    %12 = arith.truncf %11 : vector<8x128xf32> to vector<8x128xbf16>
    %c0_8 = arith.constant 0 : index
    %c0_9 = arith.constant 0 : index
    %13 = vector.load %arg4[%c0_8, %c0_9] : memref<128x128xbf16, #tpu.memory_space<vmem>>, vector<128x128xbf16>
    %cst_10 = arith.constant dense<0.000000e+00> : vector<8x128xf32>
    %14 = tpu.matmul %12, %13, %cst_10 {dimension_numbers = #tpu.dot_dimension_numbers<[1], [0], [0], [1], [0, 0, 1, 1], [], []>} : vector<8x128xbf16>, vector<128x128xbf16>, vector<8x128xf32> -> vector<8x128xf32>
    %c0_11 = arith.constant 0 : index
    %c0_12 = arith.constant 0 : index
    %15 = vector.load %arg5[%c0_11, %c0_12] : memref<1x128xf32, #tpu.memory_space<vmem>>, vector<1x128xf32>
    %16 = vector.broadcast %15 : vector<1x128xf32> to vector<8x128xf32>
    %17 = arith.addf %14, %16 : vector<8x128xf32>
    %c0_13 = arith.constant 0 : index
    %c0_14 = arith.constant 0 : index
    %18 = vector.load %arg6[%c0_13, %c0_14] : memref<8x128xf32, #tpu.memory_space<vmem>>, vector<8x128xf32>
    tpu.vector_store %arg6[%c0_13, %c0_14], %17 {strides = array<i32>} : memref<8x128xf32, #tpu.memory_space<vmem>>, vector<8x128xf32>,
    return
  }
  func.func @transform_0(%arg0: i32) -> (i32, i32) {
    %c0_i32 = arith.constant 0 : i32
    %c0_i32_0 = arith.constant 0 : i32
    return %arg0, %c0_i32 : i32, i32
  }
  func.func @transform_1(%arg0: i32) -> (i32, i32) {
    %c0_i32 = arith.constant 0 : i32
    %c0_i32_0 = arith.constant 0 : i32
    %c0_i32_1 = arith.constant 0 : i32
    return %c0_i32, %c0_i32_0 : i32, i32
  }
  func.func @transform_2(%arg0: i32) -> (i32, i32) {
    %c0_i32 = arith.constant 0 : i32
    %c0_i32_0 = arith.constant 0 : i32
    %c0_i32_1 = arith.constant 0 : i32
    return %c0_i32, %c0_i32_0 : i32, i32
  }
  func.func @transform_3(%arg0: i32) -> (i32, i32) {
    %c0_i32 = arith.constant 0 : i32
    %c0_i32_0 = arith.constant 0 : i32
    %c0_i32_1 = arith.constant 0 : i32
    return %c0_i32, %c0_i32_0 : i32, i32
  }
  func.func @transform_4(%arg0: i32) -> (i32, i32) {
    %c0_i32 = arith.constant 0 : i32
    %c0_i32_0 = arith.constant 0 : i32
    %c0_i32_1 = arith.constant 0 : i32
    return %c0_i32, %c0_i32_0 : i32, i32
  }
  func.func @transform_5(%arg0: i32) -> (i32, i32) {
    %c0_i32 = arith.constant 0 : i32
    %c0_i32_0 = arith.constant 0 : i32
    return %arg0, %c0_i32 : i32, i32
  }
}

</mosaic_0001>

<llo_original>
// kernel: tpu_custom_call.1
$region0: #{tpu_custom_call.1}
  #allocation0 [shape = 'u32[]', space=smem, size = 0x4, offset = 0x4, fixed_abs, tag = 'smem constant byte address 0x4 - core index']
  #allocation1 [shape = 'u32[144,128]{1,0:T(1,128)}', space=vmem, size = 0x12000, scoped, tag = 'internal scratch']
  %s0 = inlined_call_operand.vmem [shape: bf16[2048,36], index: 0, kind: input, shape index: {}]
  %s1 = inlined_call_operand.vmem [shape: bf16[36,128], index: 1, kind: input, shape index: {}]
  %s2 = inlined_call_operand.vmem [shape: f32[1,128], index: 2, kind: input, shape index: {}]
  %s3 = inlined_call_operand.vmem [shape: bf16[128,128], index: 3, kind: input, shape index: {}]
  %s4 = inlined_call_operand.vmem [shape: f32[1,128], index: 4, kind: input, shape index: {}]
  %s5 = inlined_call_operand.hbm [shape: f32[8,128], index: 5, kind: output, shape index: {}]
  %s6 = sld [smem:[#allocation0]]
  $region30: #{tpu_custom_call.1} parent=0
    _
  %s8 = ssub.s32 1, %s6
  %s9 = scalar_select 0, %s8, %s6
  $region1: #{tpu_custom_call.1} parent=0
    #allocation2 [shape = 'u8[4096]{0}', space=vmem, size = 0x1000, scoped, tag = 'output window, operand 0, single buffered']
    #allocation3 [shape = 's32[1]{0}', space=sflag, size = 0x4, scoped, tag = 'scoped memory for tpu_custom_call.1']
    %10 = vsyncpa [#allocation3], 0
    // Predicated region
    $region2: #{tpu_custom_call.1} parent=1 // pred_check
      _
    $region3: #{tpu_custom_call.1} parent=1 // pred_check_branch
      %12 = sbr.rel (0) target = $region5
    $region4: #{tpu_custom_call.1} parent=1 // pred_region
      _
    $region5: #{tpu_custom_call.1} parent=1 // pred_fallthru
      _
    // Predicated region
    $region6: #{tpu_custom_call.1} parent=1 // pred_check
      _
    $region7: #{tpu_custom_call.1} parent=1 // pred_check_branch
      %14 = sbr.rel (0) target = $region9
    $region8: #{tpu_custom_call.1} parent=1 // pred_region
      _
    $region9: #{tpu_custom_call.1} parent=1 // pred_fallthru
      _
    // Predicated region
    $region10: #{tpu_custom_call.1} parent=1 // pred_check
      _
    $region11: #{tpu_custom_call.1} parent=1 // pred_check_branch
      %16 = sbr.rel (0) target = $region13
    $region12: #{tpu_custom_call.1} parent=1 // pred_region
      _
    $region13: #{tpu_custom_call.1} parent=1 // pred_fallthru
      _
    // Predicated region
    $region14: #{tpu_custom_call.1} parent=1 // pred_check
      _
    $region15: #{tpu_custom_call.1} parent=1 // pred_check_branch
      %18 = sbr.rel (0) target = $region17
    $region16: #{tpu_custom_call.1} parent=1 // pred_region
      _
    $region17: #{tpu_custom_call.1} parent=1 // pred_fallthru
      _
    // Predicated region
    $region18: #{tpu_custom_call.1} parent=1 // pred_check
      _
    $region19: #{tpu_custom_call.1} parent=1 // pred_check_branch
      %20 = sbr.rel (0) target = $region21
    $region20: #{tpu_custom_call.1} parent=1 // pred_region
      _
    $region21: #{tpu_custom_call.1} parent=1 // pred_fallthru
      _
    %v22 = vld [vmem:[%s0] sm:$0xf]
    %v23 = vld [vmem:[%s0 + $0x4] sm:$0xf]
    %v24 = vld [vmem:[%s0 + $0x8] sm:$0xf]
    %v25 = vld [vmem:[%s0 + $0xc] sm:$0xf]
    %v26 = vld [vmem:[%s0 + $0x10] sm:$0xf]
    %v27 = vld [vmem:[%s0 + $0x14] sm:$0xf]
    %v28 = vld [vmem:[%s0 + $0x18] sm:$0xf]
    %v29 = vld [vmem:[%s0 + $0x1c] sm:$0xf]
    %v30 = vld [vmem:[%s0 + $0x20] sm:$0xf]
    %v31 = vld [vmem:[%s0 + $0x24] sm:$0xf]
    %v32 = vld [vmem:[%s0 + $0x28] sm:$0xf]
    %v33 = vld [vmem:[%s0 + $0x2c] sm:$0xf]
    %v34 = vld [vmem:[%s0 + $0x30] sm:$0xf]
    %v35 = vld [vmem:[%s0 + $0x34] sm:$0xf]
    %v36 = vld [vmem:[%s0 + $0x38] sm:$0xf]
    %v37 = vld [vmem:[%s0 + $0x3c] sm:$0xf]
    %v38 = vld [vmem:[%s0 + $0x40] sm:$0xf]
    %v39 = vld [vmem:[%s0 + $0x44] sm:$0xf]
    %v40 = vld [vmem:[%s0 + $0x48] sm:$0xf]
    %v41 = vld [vmem:[%s0 + $0x4c] sm:$0xf]
    %v42 = vld [vmem:[%s0 + $0x50] sm:$0xf]
    %v43 = vld [vmem:[%s0 + $0x54] sm:$0xf]
    %v44 = vld [vmem:[%s0 + $0x58] sm:$0xf]
    %v45 = vld [vmem:[%s0 + $0x5c] sm:$0xf]
    %v46 = vld [vmem:[%s0 + $0x60] sm:$0xf]
    %v47 = vld [vmem:[%s0 + $0x64] sm:$0xf]
    %v48 = vld [vmem:[%s0 + $0x68] sm:$0xf]
    %v49 = vld [vmem:[%s0 + $0x6c] sm:$0xf]
    %v50 = vld [vmem:[%s0 + $0x70] sm:$0xf]
    %v51 = vld [vmem:[%s0 + $0x74] sm:$0xf]
    %v52 = vld [vmem:[%s0 + $0x78] sm:$0xf]
    %v53 = vld [vmem:[%s0 + $0x7c] sm:$0xf]
    %v54 = vld [vmem:[%s0 + $0x80] sm:$0xf]
    %v55 = vld [vmem:[%s0 + $0x84] sm:$0xf]
    %v56 = vld [vmem:[%s0 + $0x88] sm:$0xf]
    %v57 = vld [vmem:[%s0 + $0x8c] sm:$0xf]
    %v58 = vld [vmem:[%s0 + $0x90] sm:$0xf]
    %v59 = vld [vmem:[%s0 + $0x94] sm:$0xf]
    %v60 = vld [vmem:[%s0 + $0x98] sm:$0xf]
    %v61 = vld [vmem:[%s0 + $0x9c] sm:$0xf]
    %v62 = vld [vmem:[%s0 + $0xa0] sm:$0xf]
    %v63 = vld [vmem:[%s0 + $0xa4] sm:$0xf]
    %v64 = vld [vmem:[%s0 + $0xa8] sm:$0xf]
    %v65 = vld [vmem:[%s0 + $0xac] sm:$0xf]
    %v66 = vld [vmem:[%s0 + $0xb0] sm:$0xf]
    %v67 = vld [vmem:[%s0 + $0xb4] sm:$0xf]
    %v68 = vld [vmem:[%s0 + $0xb8] sm:$0xf]
    %v69 = vld [vmem:[%s0 + $0xbc] sm:$0xf]
    %v70 = vld [vmem:[%s0 + $0xc0] sm:$0xf]
    %v71 = vld [vmem:[%s0 + $0xc4] sm:$0xf]
    %v72 = vld [vmem:[%s0 + $0xc8] sm:$0xf]
    %v73 = vld [vmem:[%s0 + $0xcc] sm:$0xf]
    %v74 = vld [vmem:[%s0 + $0xd0] sm:$0xf]
    %v75 = vld [vmem:[%s0 + $0xd4] sm:$0xf]
    %v76 = vld [vmem:[%s0 + $0xd8] sm:$0xf]
    %v77 = vld [vmem:[%s0 + $0xdc] sm:$0xf]
    %v78 = vld [vmem:[%s0 + $0xe0] sm:$0xf]
    %v79 = vld [vmem:[%s0 + $0xe4] sm:$0xf]
    %v80 = vld [vmem:[%s0 + $0xe8] sm:$0xf]
    %v81 = vld [vmem:[%s0 + $0xec] sm:$0xf]
    %v82 = vld [vmem:[%s0 + $0xf0] sm:$0xf]
    %v83 = vld [vmem:[%s0 + $0xf4] sm:$0xf]
    %v84 = vld [vmem:[%s0 + $0xf8] sm:$0xf]
    %v85 = vld [vmem:[%s0 + $0xfc] sm:$0xf]
    %v86 = vld [vmem:[%s0 + $0x100] sm:$0xf]
    %v87 = vld [vmem:[%s0 + $0x104] sm:$0xf]
    %v88 = vld [vmem:[%s0 + $0x108] sm:$0xf]
    %v89 = vld [vmem:[%s0 + $0x10c] sm:$0xf]
    %v90 = vld [vmem:[%s0 + $0x110] sm:$0xf]
    %v91 = vld [vmem:[%s0 + $0x114] sm:$0xf]
    %v92 = vld [vmem:[%s0 + $0x118] sm:$0xf]
    %v93 = vld [vmem:[%s0 + $0x11c] sm:$0xf]
    %v94 = vld [vmem:[%s0 + $0x120] sm:$0xf]
    %v95 = vld [vmem:[%s0 + $0x124] sm:$0xf]
    %v96 = vld [vmem:[%s0 + $0x128] sm:$0xf]
    %v97 = vld [vmem:[%s0 + $0x12c] sm:$0xf]
    %v98 = vld [vmem:[%s0 + $0x130] sm:$0xf]
    %v99 = vld [vmem:[%s0 + $0x134] sm:$0xf]
    %v100 = vld [vmem:[%s0 + $0x138] sm:$0xf]
    %v101 = vld [vmem:[%s0 + $0x13c] sm:$0xf]
    %v102 = vld [vmem:[%s0 + $0x140] sm:$0xf]
    %v103 = vld [vmem:[%s0 + $0x144] sm:$0xf]
    %v104 = vld [vmem:[%s0 + $0x148] sm:$0xf]
    %v105 = vld [vmem:[%s0 + $0x14c] sm:$0xf]
    %v106 = vld [vmem:[%s0 + $0x150] sm:$0xf]
    %v107 = vld [vmem:[%s0 + $0x154] sm:$0xf]
    %v108 = vld [vmem:[%s0 + $0x158] sm:$0xf]
    %v109 = vld [vmem:[%s0 + $0x15c] sm:$0xf]
    %v110 = vld [vmem:[%s0 + $0x160] sm:$0xf]
    %v111 = vld [vmem:[%s0 + $0x164] sm:$0xf]
    %v112 = vld [vmem:[%s0 + $0x168] sm:$0xf]
    %v113 = vld [vmem:[%s0 + $0x16c] sm:$0xf]
    %v114 = vld [vmem:[%s0 + $0x170] sm:$0xf]
    %v115 = vld [vmem:[%s0 + $0x174] sm:$0xf]
    %v116 = vld [vmem:[%s0 + $0x178] sm:$0xf]
    %v117 = vld [vmem:[%s0 + $0x17c] sm:$0xf]
    %v118 = vld [vmem:[%s0 + $0x180] sm:$0xf]
    %v119 = vld [vmem:[%s0 + $0x184] sm:$0xf]
    %v120 = vld [vmem:[%s0 + $0x188] sm:$0xf]
    %v121 = vld [vmem:[%s0 + $0x18c] sm:$0xf]
    %v122 = vld [vmem:[%s0 + $0x190] sm:$0xf]
    %v123 = vld [vmem:[%s0 + $0x194] sm:$0xf]
    %v124 = vld [vmem:[%s0 + $0x198] sm:$0xf]
    %v125 = vld [vmem:[%s0 + $0x19c] sm:$0xf]
    %v126 = vld [vmem:[%s0 + $0x1a0] sm:$0xf]
    %v127 = vld [vmem:[%s0 + $0x1a4] sm:$0xf]
    %v128 = vld [vmem:[%s0 + $0x1a8] sm:$0xf]
    %v129 = vld [vmem:[%s0 + $0x1ac] sm:$0xf]
    %v130 = vld [vmem:[%s0 + $0x1b0] sm:$0xf]
    %v131 = vld [vmem:[%s0 + $0x1b4] sm:$0xf]
    %v132 = vld [vmem:[%s0 + $0x1b8] sm:$0xf]
    %v133 = vld [vmem:[%s0 + $0x1bc] sm:$0xf]
    %v134 = vld [vmem:[%s0 + $0x1c0] sm:$0xf]
    %v135 = vld [vmem:[%s0 + $0x1c4] sm:$0xf]
    %v136 = vld [vmem:[%s0 + $0x1c8] sm:$0xf]
    %v137 = vld [vmem:[%s0 + $0x1cc] sm:$0xf]
    %v138 = vld [vmem:[%s0 + $0x1d0] sm:$0xf]
    %v139 = vld [vmem:[%s0 + $0x1d4] sm:$0xf]
    %v140 = vld [vmem:[%s0 + $0x1d8] sm:$0xf]
    %v141 = vld [vmem:[%s0 + $0x1dc] sm:$0xf]
    %v142 = vld [vmem:[%s0 + $0x1e0] sm:$0xf]
    %v143 = vld [vmem:[%s0 + $0x1e4] sm:$0xf]
    %v144 = vld [vmem:[%s0 + $0x1e8] sm:$0xf]
    %v145 = vld [vmem:[%s0 + $0x1ec] sm:$0xf]
    %v146 = vld [vmem:[%s0 + $0x1f0] sm:$0xf]
    %v147 = vld [vmem:[%s0 + $0x1f4] sm:$0xf]
    %v148 = vld [vmem:[%s0 + $0x1f8] sm:$0xf]
    %v149 = vld [vmem:[%s0 + $0x1fc] sm:$0xf]
    %v150 = vld [vmem:[%s0 + $0x200] sm:$0xf]
    %v151 = vld [vmem:[%s0 + $0x204] sm:$0xf]
    %v152 = vld [vmem:[%s0 + $0x208] sm:$0xf]
    %v153 = vld [vmem:[%s0 + $0x20c] sm:$0xf]
    %v154 = vld [vmem:[%s0 + $0x210] sm:$0xf]
    %v155 = vld [vmem:[%s0 + $0x214] sm:$0xf]
    %v156 = vld [vmem:[%s0 + $0x218] sm:$0xf]
    %v157 = vld [vmem:[%s0 + $0x21c] sm:$0xf]
    %v158 = vld [vmem:[%s0 + $0x220] sm:$0xf]
    %v159 = vld [vmem:[%s0 + $0x224] sm:$0xf]
    %v160 = vld [vmem:[%s0 + $0x228] sm:$0xf]
    %v161 = vld [vmem:[%s0 + $0x22c] sm:$0xf]
    %v162 = vld [vmem:[%s0 + $0x230] sm:$0xf]
    %v163 = vld [vmem:[%s0 + $0x234] sm:$0xf]
    %v164 = vld [vmem:[%s0 + $0x238] sm:$0xf]
    %v165 = vld [vmem:[%s0 + $0x23c] sm:$0xf]
    %v166 = vld [vmem:[%s0 + $0x240] sm:$0xf]
    %v167 = vld [vmem:[%s0 + $0x244] sm:$0xf]
    %v168 = vld [vmem:[%s0 + $0x248] sm:$0xf]
    %v169 = vld [vmem:[%s0 + $0x24c] sm:$0xf]
    %v170 = vld [vmem:[%s0 + $0x250] sm:$0xf]
    %v171 = vld [vmem:[%s0 + $0x254] sm:$0xf]
    %v172 = vld [vmem:[%s0 + $0x258] sm:$0xf]
    %v173 = vld [vmem:[%s0 + $0x25c] sm:$0xf]
    %v174 = vld [vmem:[%s0 + $0x260] sm:$0xf]
    %v175 = vld [vmem:[%s0 + $0x264] sm:$0xf]
    %v176 = vld [vmem:[%s0 + $0x268] sm:$0xf]
    %v177 = vld [vmem:[%s0 + $0x26c] sm:$0xf]
    %v178 = vld [vmem:[%s0 + $0x270] sm:$0xf]
    %v179 = vld [vmem:[%s0 + $0x274] sm:$0xf]
    %v180 = vld [vmem:[%s0 + $0x278] sm:$0xf]
    %v181 = vld [vmem:[%s0 + $0x27c] sm:$0xf]
    %v182 = vld [vmem:[%s0 + $0x280] sm:$0xf]
    %v183 = vld [vmem:[%s0 + $0x284] sm:$0xf]
    %v184 = vld [vmem:[%s0 + $0x288] sm:$0xf]
    %v185 = vld [vmem:[%s0 + $0x28c] sm:$0xf]
    %v186 = vld [vmem:[%s0 + $0x290] sm:$0xf]
    %v187 = vld [vmem:[%s0 + $0x294] sm:$0xf]
    %v188 = vld [vmem:[%s0 + $0x298] sm:$0xf]
    %v189 = vld [vmem:[%s0 + $0x29c] sm:$0xf]
    %v190 = vld [vmem:[%s0 + $0x2a0] sm:$0xf]
    %v191 = vld [vmem:[%s0 + $0x2a4] sm:$0xf]
    %v192 = vld [vmem:[%s0 + $0x2a8] sm:$0xf]
    %v193 = vld [vmem:[%s0 + $0x2ac] sm:$0xf]
    %v194 = vld [vmem:[%s0 + $0x2b0] sm:$0xf]
    %v195 = vld [vmem:[%s0 + $0x2b4] sm:$0xf]
    %v196 = vld [vmem:[%s0 + $0x2b8] sm:$0xf]
    %v197 = vld [vmem:[%s0 + $0x2bc] sm:$0xf]
    %v198 = vld [vmem:[%s0 + $0x2c0] sm:$0xf]
    %v199 = vld [vmem:[%s0 + $0x2c4] sm:$0xf]
    %v200 = vld [vmem:[%s0 + $0x2c8] sm:$0xf]
    %v201 = vld [vmem:[%s0 + $0x2cc] sm:$0xf]
    %v202 = vld [vmem:[%s0 + $0x2d0] sm:$0xf]
    %v203 = vld [vmem:[%s0 + $0x2d4] sm:$0xf]
    %v204 = vld [vmem:[%s0 + $0x2d8] sm:$0xf]
    %v205 = vld [vmem:[%s0 + $0x2dc] sm:$0xf]
    %v206 = vld [vmem:[%s0 + $0x2e0] sm:$0xf]
    %v207 = vld [vmem:[%s0 + $0x2e4] sm:$0xf]
    %v208 = vld [vmem:[%s0 + $0x2e8] sm:$0xf]
    %v209 = vld [vmem:[%s0 + $0x2ec] sm:$0xf]
    %v210 = vld [vmem:[%s0 + $0x2f0] sm:$0xf]
    %v211 = vld [vmem:[%s0 + $0x2f4] sm:$0xf]
    %v212 = vld [vmem:[%s0 + $0x2f8] sm:$0xf]
    %v213 = vld [vmem:[%s0 + $0x2fc] sm:$0xf]
    %v214 = vld [vmem:[%s0 + $0x300] sm:$0xf]
    %v215 = vld [vmem:[%s0 + $0x304] sm:$0xf]
    %v216 = vld [vmem:[%s0 + $0x308] sm:$0xf]
    %v217 = vld [vmem:[%s0 + $0x30c] sm:$0xf]
    %v218 = vld [vmem:[%s0 + $0x310] sm:$0xf]
    %v219 = vld [vmem:[%s0 + $0x314] sm:$0xf]
    %v220 = vld [vmem:[%s0 + $0x318] sm:$0xf]
    %v221 = vld [vmem:[%s0 + $0x31c] sm:$0xf]
    %v222 = vld [vmem:[%s0 + $0x320] sm:$0xf]
    %v223 = vld [vmem:[%s0 + $0x324] sm:$0xf]
    %v224 = vld [vmem:[%s0 + $0x328] sm:$0xf]
    %v225 = vld [vmem:[%s0 + $0x32c] sm:$0xf]
    %v226 = vld [vmem:[%s0 + $0x330] sm:$0xf]
    %v227 = vld [vmem:[%s0 + $0x334] sm:$0xf]
    %v228 = vld [vmem:[%s0 + $0x338] sm:$0xf]
    %v229 = vld [vmem:[%s0 + $0x33c] sm:$0xf]
    %v230 = vld [vmem:[%s0 + $0x340] sm:$0xf]
    %v231 = vld [vmem:[%s0 + $0x344] sm:$0xf]
    %v232 = vld [vmem:[%s0 + $0x348] sm:$0xf]
    %v233 = vld [vmem:[%s0 + $0x34c] sm:$0xf]
    %v234 = vld [vmem:[%s0 + $0x350] sm:$0xf]
    %v235 = vld [vmem:[%s0 + $0x354] sm:$0xf]
    %v236 = vld [vmem:[%s0 + $0x358] sm:$0xf]
    %v237 = vld [vmem:[%s0 + $0x35c] sm:$0xf]
    %v238 = vld [vmem:[%s0 + $0x360] sm:$0xf]
    %v239 = vld [vmem:[%s0 + $0x364] sm:$0xf]
    %v240 = vld [vmem:[%s0 + $0x368] sm:$0xf]
    %v241 = vld [vmem:[%s0 + $0x36c] sm:$0xf]
    %v242 = vld [vmem:[%s0 + $0x370] sm:$0xf]
    %v243 = vld [vmem:[%s0 + $0x374] sm:$0xf]
    %v244 = vld [vmem:[%s0 + $0x378] sm:$0xf]
    %v245 = vld [vmem:[%s0 + $0x37c] sm:$0xf]
    %v246 = vld [vmem:[%s0 + $0x380] sm:$0xf]
    %v247 = vld [vmem:[%s0 + $0x384] sm:$0xf]
    %v248 = vld [vmem:[%s0 + $0x388] sm:$0xf]
    %v249 = vld [vmem:[%s0 + $0x38c] sm:$0xf]
    %v250 = vld [vmem:[%s0 + $0x390] sm:$0xf]
    %v251 = vld [vmem:[%s0 + $0x394] sm:$0xf]
    %v252 = vld [vmem:[%s0 + $0x398] sm:$0xf]
    %v253 = vld [vmem:[%s0 + $0x39c] sm:$0xf]
    %v254 = vld [vmem:[%s0 + $0x3a0] sm:$0xf]
    %v255 = vld [vmem:[%s0 + $0x3a4] sm:$0xf]
    %v256 = vld [vmem:[%s0 + $0x3a8] sm:$0xf]
    %v257 = vld [vmem:[%s0 + $0x3ac] sm:$0xf]
    %v258 = vld [vmem:[%s0 + $0x3b0] sm:$0xf]
    %v259 = vld [vmem:[%s0 + $0x3b4] sm:$0xf]
    %v260 = vld [vmem:[%s0 + $0x3b8] sm:$0xf]
    %v261 = vld [vmem:[%s0 + $0x3bc] sm:$0xf]
    %v262 = vld [vmem:[%s0 + $0x3c0] sm:$0xf]
    %v263 = vld [vmem:[%s0 + $0x3c4] sm:$0xf]
    %v264 = vld [vmem:[%s0 + $0x3c8] sm:$0xf]
    %v265 = vld [vmem:[%s0 + $0x3cc] sm:$0xf]
    %v266 = vld [vmem:[%s0 + $0x3d0] sm:$0xf]
    %v267 = vld [vmem:[%s0 + $0x3d4] sm:$0xf]
    %v268 = vld [vmem:[%s0 + $0x3d8] sm:$0xf]
    %v269 = vld [vmem:[%s0 + $0x3dc] sm:$0xf]
    %v270 = vld [vmem:[%s0 + $0x3e0] sm:$0xf]
    %v271 = vld [vmem:[%s0 + $0x3e4] sm:$0xf]
    %v272 = vld [vmem:[%s0 + $0x3e8] sm:$0xf]
    %v273 = vld [vmem:[%s0 + $0x3ec] sm:$0xf]
    %v274 = vld [vmem:[%s0 + $0x3f0] sm:$0xf]
    %v275 = vld [vmem:[%s0 + $0x3f4] sm:$0xf]
    %v276 = vld [vmem:[%s0 + $0x3f8] sm:$0xf]
    %v277 = vld [vmem:[%s0 + $0x3fc] sm:$0xf]
    %v278 = vld [vmem:[%s1] sm:$0xf]
    %v279 = vld [vmem:[%s1 + $0x4] sm:$0xf]
    %v280 = vld [vmem:[%s1 + $0x8] sm:$0xf]
    %v281 = vld [vmem:[%s1 + $0xc] sm:$0xf]
    %v282 = vld [vmem:[%s1 + $0x10] sm:$0x3]
    %v283 = vld [vmem:[%s2] sm:$0x1]
    %v285 = vlaneseq
    %v286 = vshrl.u32 %v285, 7
    %v287 = vsub.s32 0, %v286
    %v288 = vrot.slane %v283, %v287
    %v546 = vunpack.c.l.b16 %v22
    %v547 = vunpack.c.l.b16 %v23
    %v548 = vunpack.c.l.b16 %v24
    %v549 = vunpack.c.l.b16 %v25
    %v550 = vunpack.c.l.b16 %v26
    %v551 = vunpack.c.l.b16 %v27
    %v552 = vunpack.c.l.b16 %v28
    %v553 = vunpack.c.l.b16 %v29
    %v554 = vunpack.c.l.b16 %v30
    %v555 = vunpack.c.l.b16 %v31
    %v556 = vunpack.c.l.b16 %v32
    %v557 = vunpack.c.l.b16 %v33
    %v558 = vunpack.c.l.b16 %v34
    %v559 = vunpack.c.l.b16 %v35
    %v560 = vunpack.c.l.b16 %v36
    %v561 = vunpack.c.l.b16 %v37
    %v562 = vunpack.c.l.b16 %v38
    %v563 = vunpack.c.l.b16 %v39
    %v564 = vunpack.c.l.b16 %v40
    %v565 = vunpack.c.l.b16 %v41
    %v566 = vunpack.c.l.b16 %v42
    %v567 = vunpack.c.l.b16 %v43
    %v568 = vunpack.c.l.b16 %v44
    %v569 = vunpack.c.l.b16 %v45
    %v570 = vunpack.c.l.b16 %v46
    %v571 = vunpack.c.l.b16 %v47
    %v572 = vunpack.c.l.b16 %v48
    %v573 = vunpack.c.l.b16 %v49
    %v574 = vunpack.c.l.b16 %v50
    %v575 = vunpack.c.l.b16 %v51
    %v576 = vunpack.c.l.b16 %v52
    %v577 = vunpack.c.l.b16 %v53
    %v578 = vunpack.c.l.b16 %v54
    %v579 = vunpack.c.l.b16 %v55
    %v580 = vunpack.c.l.b16 %v56
    %v581 = vunpack.c.l.b16 %v57
    %v582 = vunpack.c.l.b16 %v58
    %v583 = vunpack.c.l.b16 %v59
    %v584 = vunpack.c.l.b16 %v60
    %v585 = vunpack.c.l.b16 %v61
    %v586 = vunpack.c.l.b16 %v62
    %v587 = vunpack.c.l.b16 %v63
    %v588 = vunpack.c.l.b16 %v64
    %v589 = vunpack.c.l.b16 %v65
    %v590 = vunpack.c.l.b16 %v66
    %v591 = vunpack.c.l.b16 %v67
    %v592 = vunpack.c.l.b16 %v68
    %v593 = vunpack.c.l.b16 %v69
    %v594 = vunpack.c.l.b16 %v70
    %v595 = vunpack.c.l.b16 %v71
    %v596 = vunpack.c.l.b16 %v72
    %v597 = vunpack.c.l.b16 %v73
    %v598 = vunpack.c.l.b16 %v74
    %v599 = vunpack.c.l.b16 %v75
    %v600 = vunpack.c.l.b16 %v76
    %v601 = vunpack.c.l.b16 %v77
    %v602 = vunpack.c.l.b16 %v78
    %v603 = vunpack.c.l.b16 %v79
    %v604 = vunpack.c.l.b16 %v80
    %v605 = vunpack.c.l.b16 %v81
    %v606 = vunpack.c.l.b16 %v82
    %v607 = vunpack.c.l.b16 %v83
    %v608 = vunpack.c.l.b16 %v84
    %v609 = vunpack.c.l.b16 %v85
    %v610 = vunpack.c.l.b16 %v86
    %v611 = vunpack.c.l.b16 %v87
    %v612 = vunpack.c.l.b16 %v88
    %v613 = vunpack.c.l.b16 %v89
    %v614 = vunpack.c.l.b16 %v90
    %v615 = vunpack.c.l.b16 %v91
    %v616 = vunpack.c.l.b16 %v92
    %v617 = vunpack.c.l.b16 %v93
    %v618 = vunpack.c.l.b16 %v94
    %v619 = vunpack.c.l.b16 %v95
    %v620 = vunpack.c.l.b16 %v96
    %v621 = vunpack.c.l.b16 %v97
    %v622 = vunpack.c.l.b16 %v98
    %v623 = vunpack.c.l.b16 %v99
    %v624 = vunpack.c.l.b16 %v100
    %v625 = vunpack.c.l.b16 %v101
    %v626 = vunpack.c.l.b16 %v102
    %v627 = vunpack.c.l.b16 %v103
    %v628 = vunpack.c.l.b16 %v104
    %v629 = vunpack.c.l.b16 %v105
    %v630 = vunpack.c.l.b16 %v106
    %v631 = vunpack.c.l.b16 %v107
    %v632 = vunpack.c.l.b16 %v108
    %v633 = vunpack.c.l.b16 %v109
    %v634 = vunpack.c.l.b16 %v110
    %v635 = vunpack.c.l.b16 %v111
    %v636 = vunpack.c.l.b16 %v112
    %v637 = vunpack.c.l.b16 %v113
    %v638 = vunpack.c.l.b16 %v114
    %v639 = vunpack.c.l.b16 %v115
    %v640 = vunpack.c.l.b16 %v116
    %v641 = vunpack.c.l.b16 %v117
    %v642 = vunpack.c.l.b16 %v118
    %v643 = vunpack.c.l.b16 %v119
    %v644 = vunpack.c.l.b16 %v120
    %v645 = vunpack.c.l.b16 %v121
    %v646 = vunpack.c.l.b16 %v122
    %v647 = vunpack.c.l.b16 %v123
    %v648 = vunpack.c.l.b16 %v124
    %v649 = vunpack.c.l.b16 %v125
    %v650 = vunpack.c.l.b16 %v126
    %v651 = vunpack.c.l.b16 %v127
    %v652 = vunpack.c.l.b16 %v128
    %v653 = vunpack.c.l.b16 %v129
    %v654 = vunpack.c.l.b16 %v130
    %v655 = vunpack.c.l.b16 %v131
    %v656 = vunpack.c.l.b16 %v132
    %v657 = vunpack.c.l.b16 %v133
    %v658 = vunpack.c.l.b16 %v134
    %v659 = vunpack.c.l.b16 %v135
    %v660 = vunpack.c.l.b16 %v136
    %v661 = vunpack.c.l.b16 %v137
    %v662 = vunpack.c.l.b16 %v138
    %v663 = vunpack.c.l.b16 %v139
    %v664 = vunpack.c.l.b16 %v140
    %v665 = vunpack.c.l.b16 %v141
    %v666 = vunpack.c.l.b16 %v142
    %v667 = vunpack.c.l.b16 %v143
    %v668 = vunpack.c.l.b16 %v144
    %v669 = vunpack.c.l.b16 %v145
    %v670 = vunpack.c.l.b16 %v146
    %v671 = vunpack.c.l.b16 %v147
    %v672 = vunpack.c.l.b16 %v148
    %v673 = vunpack.c.l.b16 %v149
    %v674 = vunpack.c.l.b16 %v150
    %v675 = vunpack.c.l.b16 %v151
    %v676 = vunpack.c.l.b16 %v152
    %v677 = vunpack.c.l.b16 %v153
    %v678 = vunpack.c.l.b16 %v154
    %v679 = vunpack.c.l.b16 %v155
    %v680 = vunpack.c.l.b16 %v156
    %v681 = vunpack.c.l.b16 %v157
    %v682 = vunpack.c.l.b16 %v158
    %v683 = vunpack.c.l.b16 %v159
    %v684 = vunpack.c.l.b16 %v160
    %v685 = vunpack.c.l.b16 %v161
    %v686 = vunpack.c.l.b16 %v162
    %v687 = vunpack.c.l.b16 %v163
    %v688 = vunpack.c.l.b16 %v164
    %v689 = vunpack.c.l.b16 %v165
    %v690 = vunpack.c.l.b16 %v166
    %v691 = vunpack.c.l.b16 %v167
    %v692 = vunpack.c.l.b16 %v168
    %v693 = vunpack.c.l.b16 %v169
    %v694 = vunpack.c.l.b16 %v170
    %v695 = vunpack.c.l.b16 %v171
    %v696 = vunpack.c.l.b16 %v172
    %v697 = vunpack.c.l.b16 %v173
    %v698 = vunpack.c.l.b16 %v174
    %v699 = vunpack.c.l.b16 %v175
    %v700 = vunpack.c.l.b16 %v176
    %v701 = vunpack.c.l.b16 %v177
    %v702 = vunpack.c.l.b16 %v178
    %v703 = vunpack.c.l.b16 %v179
    %v704 = vunpack.c.l.b16 %v180
    %v705 = vunpack.c.l.b16 %v181
    %v706 = vunpack.c.l.b16 %v182
    %v707 = vunpack.c.l.b16 %v183
    %v708 = vunpack.c.l.b16 %v184
    %v709 = vunpack.c.l.b16 %v185
    %v710 = vunpack.c.l.b16 %v186
    %v711 = vunpack.c.l.b16 %v187
    %v712 = vunpack.c.l.b16 %v188
    %v713 = vunpack.c.l.b16 %v189
    %v714 = vunpack.c.l.b16 %v190
    %v715 = vunpack.c.l.b16 %v191
    %v716 = vunpack.c.l.b16 %v192
    %v717 = vunpack.c.l.b16 %v193
    %v718 = vunpack.c.l.b16 %v194
    %v719 = vunpack.c.l.b16 %v195
    %v720 = vunpack.c.l.b16 %v196
    %v721 = vunpack.c.l.b16 %v197
    %v722 = vunpack.c.l.b16 %v198
    %v723 = vunpack.c.l.b16 %v199
    %v724 = vunpack.c.l.b16 %v200
    %v725 = vunpack.c.l.b16 %v201
    %v726 = vunpack.c.l.b16 %v202
    %v727 = vunpack.c.l.b16 %v203
    %v728 = vunpack.c.l.b16 %v204
    %v729 = vunpack.c.l.b16 %v205
    %v730 = vunpack.c.l.b16 %v206
    %v731 = vunpack.c.l.b16 %v207
    %v732 = vunpack.c.l.b16 %v208
    %v733 = vunpack.c.l.b16 %v209
    %v734 = vunpack.c.l.b16 %v210
    %v735 = vunpack.c.l.b16 %v211
    %v736 = vunpack.c.l.b16 %v212
    %v737 = vunpack.c.l.b16 %v213
    %v738 = vunpack.c.l.b16 %v214
    %v739 = vunpack.c.l.b16 %v215
    %v740 = vunpack.c.l.b16 %v216
    %v741 = vunpack.c.l.b16 %v217
    %v742 = vunpack.c.l.b16 %v218
    %v743 = vunpack.c.l.b16 %v219
    %v744 = vunpack.c.l.b16 %v220
    %v745 = vunpack.c.l.b16 %v221
    %v746 = vunpack.c.l.b16 %v222
    %v747 = vunpack.c.l.b16 %v223
    %v748 = vunpack.c.l.b16 %v224
    %v749 = vunpack.c.l.b16 %v225
    %v750 = vunpack.c.l.b16 %v226
    %v751 = vunpack.c.l.b16 %v227
    %v752 = vunpack.c.l.b16 %v228
    %v753 = vunpack.c.l.b16 %v229
    %v754 = vunpack.c.l.b16 %v230
    %v755 = vunpack.c.l.b16 %v231
    %v756 = vunpack.c.l.b16 %v232
    %v757 = vunpack.c.l.b16 %v233
    %v758 = vunpack.c.l.b16 %v234
    %v759 = vunpack.c.l.b16 %v235
    %v760 = vunpack.c.l.b16 %v236
    %v761 = vunpack.c.l.b16 %v237
    %v762 = vunpack.c.l.b16 %v238
    %v763 = vunpack.c.l.b16 %v239
    %v764 = vunpack.c.l.b16 %v240
    %v765 = vunpack.c.l.b16 %v241
    %v766 = vunpack.c.l.b16 %v242
    %v767 = vunpack.c.l.b16 %v243
    %v768 = vunpack.c.l.b16 %v244
    %v769 = vunpack.c.l.b16 %v245
    %v770 = vunpack.c.l.b16 %v246
    %v771 = vunpack.c.l.b16 %v247
    %v772 = vunpack.c.l.b16 %v248
    %v773 = vunpack.c.l.b16 %v249
    %v774 = vunpack.c.l.b16 %v250
    %v775 = vunpack.c.l.b16 %v251
    %v776 = vunpack.c.l.b16 %v252
    %v777 = vunpack.c.l.b16 %v253
    %v778 = vunpack.c.l.b16 %v254
    %v779 = vunpack.c.l.b16 %v255
    %v780 = vunpack.c.l.b16 %v256
    %v781 = vunpack.c.l.b16 %v257
    %v782 = vunpack.c.l.b16 %v258
    %v783 = vunpack.c.l.b16 %v259
    %v784 = vunpack.c.l.b16 %v260
    %v785 = vunpack.c.l.b16 %v261
    %v786 = vunpack.c.l.b16 %v262
    %v787 = vunpack.c.l.b16 %v263
    %v788 = vunpack.c.l.b16 %v264
    %v789 = vunpack.c.l.b16 %v265
    %v790 = vunpack.c.l.b16 %v266
    %v791 = vunpack.c.l.b16 %v267
    %v792 = vunpack.c.l.b16 %v268
    %v793 = vunpack.c.l.b16 %v269
    %v794 = vunpack.c.l.b16 %v270
    %v795 = vunpack.c.l.b16 %v271
    %v796 = vunpack.c.l.b16 %v272
    %v797 = vunpack.c.l.b16 %v273
    %v798 = vunpack.c.l.b16 %v274
    %v799 = vunpack.c.l.b16 %v275
    %v800 = vunpack.c.l.b16 %v276
    %v801 = vunpack.c.l.b16 %v277
    %v802 = vpack.c.b16 %v547, %v546
    %v803 = vpack.c.b16 %v549, %v548
    %v804 = vpack.c.b16 %v551, %v550
    %v805 = vpack.c.b16 %v553, %v552
    %v806 = vpack.c.b16 %v555, %v554
    %v807 = vpack.c.b16 %v557, %v556
    %v808 = vpack.c.b16 %v559, %v558
    %v809 = vpack.c.b16 %v561, %v560
    %v810 = vpack.c.b16 %v563, %v562
    %v811 = vpack.c.b16 %v565, %v564
    %v812 = vpack.c.b16 %v567, %v566
    %v813 = vpack.c.b16 %v569, %v568
    %v814 = vpack.c.b16 %v571, %v570
    %v815 = vpack.c.b16 %v573, %v572
    %v816 = vpack.c.b16 %v575, %v574
    %v817 = vpack.c.b16 %v577, %v576
    %v818 = vpack.c.b16 %v579, %v578
    %v819 = vpack.c.b16 %v581, %v580
    %v820 = vpack.c.b16 %v583, %v582
    %v821 = vpack.c.b16 %v585, %v584
    %v822 = vpack.c.b16 %v587, %v586
    %v823 = vpack.c.b16 %v589, %v588
    %v824 = vpack.c.b16 %v591, %v590
    %v825 = vpack.c.b16 %v593, %v592
    %v826 = vpack.c.b16 %v595, %v594
    %v827 = vpack.c.b16 %v597, %v596
    %v828 = vpack.c.b16 %v599, %v598
    %v829 = vpack.c.b16 %v601, %v600
    %v830 = vpack.c.b16 %v603, %v602
    %v831 = vpack.c.b16 %v605, %v604
    %v832 = vpack.c.b16 %v607, %v606
    %v833 = vpack.c.b16 %v609, %v608
    %v834 = vpack.c.b16 %v611, %v610
    %v835 = vpack.c.b16 %v613, %v612
    %v836 = vpack.c.b16 %v615, %v614
    %v837 = vpack.c.b16 %v617, %v616
    %v838 = vpack.c.b16 %v619, %v618
    %v839 = vpack.c.b16 %v621, %v620
    %v840 = vpack.c.b16 %v623, %v622
    %v841 = vpack.c.b16 %v625, %v624
    %v842 = vpack.c.b16 %v627, %v626
    %v843 = vpack.c.b16 %v629, %v628
    %v844 = vpack.c.b16 %v631, %v630
    %v845 = vpack.c.b16 %v633, %v632
    %v846 = vpack.c.b16 %v635, %v634
    %v847 = vpack.c.b16 %v637, %v636
    %v848 = vpack.c.b16 %v639, %v638
    %v849 = vpack.c.b16 %v641, %v640
    %v850 = vpack.c.b16 %v643, %v642
    %v851 = vpack.c.b16 %v645, %v644
    %v852 = vpack.c.b16 %v647, %v646
    %v853 = vpack.c.b16 %v649, %v648
    %v854 = vpack.c.b16 %v651, %v650
    %v855 = vpack.c.b16 %v653, %v652
    %v856 = vpack.c.b16 %v655, %v654
    %v857 = vpack.c.b16 %v657, %v656
    %v858 = vpack.c.b16 %v659, %v658
    %v859 = vpack.c.b16 %v661, %v660
    %v860 = vpack.c.b16 %v663, %v662
    %v861 = vpack.c.b16 %v665, %v664
    %v862 = vpack.c.b16 %v667, %v666
    %v863 = vpack.c.b16 %v669, %v668
    %v864 = vpack.c.b16 %v671, %v670
    %v865 = vpack.c.b16 %v673, %v672
    %v866 = vpack.c.b16 %v675, %v674
    %v867 = vpack.c.b16 %v677, %v676
    %v868 = vpack.c.b16 %v679, %v678
    %v869 = vpack.c.b16 %v681, %v680
    %v870 = vpack.c.b16 %v683, %v682
    %v871 = vpack.c.b16 %v685, %v684
    %v872 = vpack.c.b16 %v687, %v686
    %v873 = vpack.c.b16 %v689, %v688
    %v874 = vpack.c.b16 %v691, %v690
    %v875 = vpack.c.b16 %v693, %v692
    %v876 = vpack.c.b16 %v695, %v694
    %v877 = vpack.c.b16 %v697, %v696
    %v878 = vpack.c.b16 %v699, %v698
    %v879 = vpack.c.b16 %v701, %v700
    %v880 = vpack.c.b16 %v703, %v702
    %v881 = vpack.c.b16 %v705, %v704
    %v882 = vpack.c.b16 %v707, %v706
    %v883 = vpack.c.b16 %v709, %v708
    %v884 = vpack.c.b16 %v711, %v710
    %v885 = vpack.c.b16 %v713, %v712
    %v886 = vpack.c.b16 %v715, %v714
    %v887 = vpack.c.b16 %v717, %v716
    %v888 = vpack.c.b16 %v719, %v718
    %v889 = vpack.c.b16 %v721, %v720
    %v890 = vpack.c.b16 %v723, %v722
    %v891 = vpack.c.b16 %v725, %v724
    %v892 = vpack.c.b16 %v727, %v726
    %v893 = vpack.c.b16 %v729, %v728
    %v894 = vpack.c.b16 %v731, %v730
    %v895 = vpack.c.b16 %v733, %v732
    %v896 = vpack.c.b16 %v735, %v734
    %v897 = vpack.c.b16 %v737, %v736
    %v898 = vpack.c.b16 %v739, %v738
    %v899 = vpack.c.b16 %v741, %v740
    %v900 = vpack.c.b16 %v743, %v742
    %v901 = vpack.c.b16 %v745, %v744
    %v902 = vpack.c.b16 %v747, %v746
    %v903 = vpack.c.b16 %v749, %v748
    %v904 = vpack.c.b16 %v751, %v750
    %v905 = vpack.c.b16 %v753, %v752
    %v906 = vpack.c.b16 %v755, %v754
    %v907 = vpack.c.b16 %v757, %v756
    %v908 = vpack.c.b16 %v759, %v758
    %v909 = vpack.c.b16 %v761, %v760
    %v910 = vpack.c.b16 %v763, %v762
    %v911 = vpack.c.b16 %v765, %v764
    %v912 = vpack.c.b16 %v767, %v766
    %v913 = vpack.c.b16 %v769, %v768
    %v914 = vpack.c.b16 %v771, %v770
    %v915 = vpack.c.b16 %v773, %v772
    %v916 = vpack.c.b16 %v775, %v774
    %v917 = vpack.c.b16 %v777, %v776
    %v918 = vpack.c.b16 %v779, %v778
    %v919 = vpack.c.b16 %v781, %v780
    %v920 = vpack.c.b16 %v783, %v782
    %v921 = vpack.c.b16 %v785, %v784
    %v922 = vpack.c.b16 %v787, %v786
    %v923 = vpack.c.b16 %v789, %v788
    %v924 = vpack.c.b16 %v791, %v790
    %v925 = vpack.c.b16 %v793, %v792
    %v926 = vpack.c.b16 %v795, %v794
    %v927 = vpack.c.b16 %v797, %v796
    %v928 = vpack.c.b16 %v799, %v798
    %v929 = vpack.c.b16 %v801, %v800
    %v935 = vunpack.c.l.b16 %v278
    %v936 = vunpack.c.l.b16 %v279
    %v937 = vunpack.c.l.b16 %v280
    %v938 = vunpack.c.l.b16 %v281
    %v939 = vunpack.c.l.b16 %v282
    %v940 = vpack.c.b16 %v936, %v935
    %v941 = vpack.c.b16 %v938, %v937
    %v942 = vpack.c.b16 %v939, %v939
    %vm945 = vcmask 293888
    %v947 = vsel %vm945, %v802, 0
    %v950 = vsel %vm945, %v803, 0
    %v953 = vsel %vm945, %v804, 0
    %v956 = vsel %vm945, %v805, 0
    %v959 = vsel %vm945, %v806, 0
    %v962 = vsel %vm945, %v807, 0
    %v965 = vsel %vm945, %v808, 0
    %v968 = vsel %vm945, %v809, 0
    %v971 = vsel %vm945, %v810, 0
    %v974 = vsel %vm945, %v811, 0
    %v977 = vsel %vm945, %v812, 0
    %v980 = vsel %vm945, %v813, 0
    %v983 = vsel %vm945, %v814, 0
    %v986 = vsel %vm945, %v815, 0
    %v989 = vsel %vm945, %v816, 0
    %v992 = vsel %vm945, %v817, 0
    %v995 = vsel %vm945, %v818, 0
    %v998 = vsel %vm945, %v819, 0
    %v1001 = vsel %vm945, %v820, 0
    %v1004 = vsel %vm945, %v821, 0
    %v1007 = vsel %vm945, %v822, 0
    %v1010 = vsel %vm945, %v823, 0
    %v1013 = vsel %vm945, %v824, 0
    %v1016 = vsel %vm945, %v825, 0
    %v1019 = vsel %vm945, %v826, 0
    %v1022 = vsel %vm945, %v827, 0
    %v1025 = vsel %vm945, %v828, 0
    %v1028 = vsel %vm945, %v829, 0
    %v1031 = vsel %vm945, %v830, 0
    %v1034 = vsel %vm945, %v831, 0
    %v1037 = vsel %vm945, %v832, 0
    %v1040 = vsel %vm945, %v833, 0
    %v1043 = vsel %vm945, %v834, 0
    %v1046 = vsel %vm945, %v835, 0
    %v1049 = vsel %vm945, %v836, 0
    %v1052 = vsel %vm945, %v837, 0
    %v1055 = vsel %vm945, %v838, 0
    %v1058 = vsel %vm945, %v839, 0
    %v1061 = vsel %vm945, %v840, 0
    %v1064 = vsel %vm945, %v841, 0
    %v1067 = vsel %vm945, %v842, 0
    %v1070 = vsel %vm945, %v843, 0
    %v1073 = vsel %vm945, %v844, 0
    %v1076 = vsel %vm945, %v845, 0
    %v1079 = vsel %vm945, %v846, 0
    %v1082 = vsel %vm945, %v847, 0
    %v1085 = vsel %vm945, %v848, 0
    %v1088 = vsel %vm945, %v849, 0
    %v1091 = vsel %vm945, %v850, 0
    %v1094 = vsel %vm945, %v851, 0
    %v1097 = vsel %vm945, %v852, 0
    %v1100 = vsel %vm945, %v853, 0
    %v1103 = vsel %vm945, %v854, 0
    %v1106 = vsel %vm945, %v855, 0
    %v1109 = vsel %vm945, %v856, 0
    %v1112 = vsel %vm945, %v857, 0
    %v1115 = vsel %vm945, %v858, 0
    %v1118 = vsel %vm945, %v859, 0
    %v1121 = vsel %vm945, %v860, 0
    %v1124 = vsel %vm945, %v861, 0
    %v1127 = vsel %vm945, %v862, 0
    %v1130 = vsel %vm945, %v863, 0
    %v1133 = vsel %vm945, %v864, 0
    %v1136 = vsel %vm945, %v865, 0
    %v1139 = vsel %vm945, %v866, 0
    %v1142 = vsel %vm945, %v867, 0
    %v1145 = vsel %vm945, %v868, 0
    %v1148 = vsel %vm945, %v869, 0
    %v1151 = vsel %vm945, %v870, 0
    %v1154 = vsel %vm945, %v871, 0
    %v1157 = vsel %vm945, %v872, 0
    %v1160 = vsel %vm945, %v873, 0
    %v1163 = vsel %vm945, %v874, 0
    %v1166 = vsel %vm945, %v875, 0
    %v1169 = vsel %vm945, %v876, 0
    %v1172 = vsel %vm945, %v877, 0
    %v1175 = vsel %vm945, %v878, 0
    %v1178 = vsel %vm945, %v879, 0
    %v1181 = vsel %vm945, %v880, 0
    %v1184 = vsel %vm945, %v881, 0
    %v1187 = vsel %vm945, %v882, 0
    %v1190 = vsel %vm945, %v883, 0
    %v1193 = vsel %vm945, %v884, 0
    %v1196 = vsel %vm945, %v885, 0
    %v1199 = vsel %vm945, %v886, 0
    %v1202 = vsel %vm945, %v887, 0
    %v1205 = vsel %vm945, %v888, 0
    %v1208 = vsel %vm945, %v889, 0
    %v1211 = vsel %vm945, %v890, 0
    %v1214 = vsel %vm945, %v891, 0
    %v1217 = vsel %vm945, %v892, 0
    %v1220 = vsel %vm945, %v893, 0
    %v1223 = vsel %vm945, %v894, 0
    %v1226 = vsel %vm945, %v895, 0
    %v1229 = vsel %vm945, %v896, 0
    %v1232 = vsel %vm945, %v897, 0
    %v1235 = vsel %vm945, %v898, 0
    %v1238 = vsel %vm945, %v899, 0
    %v1241 = vsel %vm945, %v900, 0
    %v1244 = vsel %vm945, %v901, 0
    %v1247 = vsel %vm945, %v902, 0
    %v1250 = vsel %vm945, %v903, 0
    %v1253 = vsel %vm945, %v904, 0
    %v1256 = vsel %vm945, %v905, 0
    %v1259 = vsel %vm945, %v906, 0
    %v1262 = vsel %vm945, %v907, 0
    %v1265 = vsel %vm945, %v908, 0
    %v1268 = vsel %vm945, %v909, 0
    %v1271 = vsel %vm945, %v910, 0
    %v1274 = vsel %vm945, %v911, 0
    %v1277 = vsel %vm945, %v912, 0
    %v1280 = vsel %vm945, %v913, 0
    %v1283 = vsel %vm945, %v914, 0
    %v1286 = vsel %vm945, %v915, 0
    %v1289 = vsel %vm945, %v916, 0
    %v1292 = vsel %vm945, %v917, 0
    %v1295 = vsel %vm945, %v918, 0
    %v1298 = vsel %vm945, %v919, 0
    %v1301 = vsel %vm945, %v920, 0
    %v1304 = vsel %vm945, %v921, 0
    %v1307 = vsel %vm945, %v922, 0
    %v1310 = vsel %vm945, %v923, 0
    %v1313 = vsel %vm945, %v924, 0
    %v1316 = vsel %vm945, %v925, 0
    %v1319 = vsel %vm945, %v926, 0
    %v1322 = vsel %vm945, %v927, 0
    %v1325 = vsel %vm945, %v928, 0
    %v1328 = vsel %vm945, %v929, 0
    %vm1330 = vcmask 1041408
    %v1332 = vsel %vm1330, %v942, 0
    %1334 = vmatprep.subr.bf16.mxu0 0
    %1335 = vmatpush1.bf16.msra.mxu0 0
    %1336 = vmatprep.subr.bf16.mxu0 0
    %1337 = vmatpush1.bf16.msra.mxu0 0
    %1338 = vmatprep.subr.bf16.mxu0 0
    %1339 = vmatpush1.bf16.msra.mxu0 0
    %1340 = vmatprep.subr.bf16.mxu0 0
    %1341 = vmatpush1.bf16.msra.mxu0 0
    %1342 = vmatprep.subr.bf16.mxu0 0
    %1343 = vmatpush1.bf16.msra.mxu0 0
    %1344 = vmatprep.subr.bf16.mxu0 0
    %1345 = vmatpush1.bf16.msra.mxu0 %v1332
    %1346 = vmatprep.subr.bf16.mxu0 0
    %1347 = vmatpush1.bf16.msra.mxu0 %v941
    %1348 = vmatprep.subr.bf16.mxu0 0
    %1349 = vmatpush1.bf16.msra.mxu0 %v940
    %1350 = vmatprep.subr.bf16.mxu0 0
    %1351 = vmatpush2.bf16.msra.mxu0 0
    %1352 = vmatprep.subr.bf16.mxu0 0
    %1353 = vmatpush2.bf16.msra.mxu0 0
    %1354 = vmatprep.subr.bf16.mxu0 0
    %1355 = vmatpush2.bf16.msra.mxu0 0
    %1356 = vmatprep.subr.bf16.mxu0 0
    %1357 = vmatpush2.bf16.msra.mxu0 0
    %1358 = vmatprep.subr.bf16.mxu0 0
    %1359 = vmatpush2.bf16.msra.mxu0 0
    %1360 = vmatprep.subr.bf16.mxu0 0
    %1361 = vmatpush2.bf16.msra.mxu0 0
    %1362 = vmatprep.subr.bf16.mxu0 0
    %1363 = vmatpush2.bf16.msra.mxu0 0
    %1364 = vmatprep.subr.bf16.mxu0 0
    %1365 = vmatpush2.bf16.msra.mxu0 0
    %1366 = vmatprep.mubr.bf16.mxu0 0
    %1367 = vmatmul.mubr.bf16.gmra.mxu0 %v947
    %v1368 = vpop.f32.mrf.mxu0
    %v1369 = vadd.f32 %v288, %v1368
    %v1370 = vpop.f32.mrf.mxu0
    %v1371 = vpop.f32.mrf.mxu0
    %v1372 = vadd.f32 %v288, %v1371
    %v1373 = vpop.f32.mrf.mxu0
    %1374 = vmatprep.mubr.bf16.mxu0 0
    %1375 = vmatmul.mubr.bf16.gmra.mxu0 %v950
    %v1376 = vpop.f32.mrf.mxu0
    %v1377 = vadd.f32 %v288, %v1376
    %v1378 = vpop.f32.mrf.mxu0
    %v1379 = vpop.f32.mrf.mxu0
    %v1380 = vadd.f32 %v288, %v1379
    %v1381 = vpop.f32.mrf.mxu0
    %1382 = vmatprep.mubr.bf16.mxu0 0
    %1383 = vmatmul.mubr.bf16.gmra.mxu0 %v953
    %v1384 = vpop.f32.mrf.mxu0
    %v1385 = vadd.f32 %v288, %v1384
    %v1386 = vpop.f32.mrf.mxu0
    %v1387 = vpop.f32.mrf.mxu0
    %v1388 = vadd.f32 %v288, %v1387
    %v1389 = vpop.f32.mrf.mxu0
    %1390 = vmatprep.mubr.bf16.mxu0 0
    %1391 = vmatmul.mubr.bf16.gmra.mxu0 %v956
    %v1392 = vpop.f32.mrf.mxu0
    %v1393 = vadd.f32 %v288, %v1392
    %v1394 = vpop.f32.mrf.mxu0
    %v1395 = vpop.f32.mrf.mxu0
    %v1396 = vadd.f32 %v288, %v1395
    %v1397 = vpop.f32.mrf.mxu0
    %1398 = vmatprep.mubr.bf16.mxu0 0
    %1399 = vmatmul.mubr.bf16.gmra.mxu0 %v959
    %v1400 = vpop.f32.mrf.mxu0
    %v1401 = vadd.f32 %v288, %v1400
    %v1402 = vpop.f32.mrf.mxu0
    %v1403 = vpop.f32.mrf.mxu0
    %v1404 = vadd.f32 %v288, %v1403
    %v1405 = vpop.f32.mrf.mxu0
    %1406 = vmatprep.mubr.bf16.mxu0 0
    %1407 = vmatmul.mubr.bf16.gmra.mxu0 %v962
    %v1408 = vpop.f32.mrf.mxu0
    %v1409 = vadd.f32 %v288, %v1408
    %v1410 = vpop.f32.mrf.mxu0
    %v1411 = vpop.f32.mrf.mxu0
    %v1412 = vadd.f32 %v288, %v1411
    %v1413 = vpop.f32.mrf.mxu0
    %1414 = vmatprep.mubr.bf16.mxu0 0
    %1415 = vmatmul.mubr.bf16.gmra.mxu0 %v965
    %v1416 = vpop.f32.mrf.mxu0
    %v1417 = vadd.f32 %v288, %v1416
    %v1418 = vpop.f32.mrf.mxu0
    %v1419 = vpop.f32.mrf.mxu0
    %v1420 = vadd.f32 %v288, %v1419
    %v1421 = vpop.f32.mrf.mxu0
    %1422 = vmatprep.mubr.bf16.mxu0 0
    %1423 = vmatmul.mubr.bf16.gmra.mxu0 %v968
    %v1424 = vpop.f32.mrf.mxu0
    %v1425 = vadd.f32 %v288, %v1424
    %v1426 = vpop.f32.mrf.mxu0
    %v1427 = vpop.f32.mrf.mxu0
    %v1428 = vadd.f32 %v288, %v1427
    %v1429 = vpop.f32.mrf.mxu0
    %1430 = vmatprep.mubr.bf16.mxu0 0
    %1431 = vmatmul.mubr.bf16.gmra.mxu0 %v971
    %v1432 = vpop.f32.mrf.mxu0
    %v1433 = vadd.f32 %v288, %v1432
    %v1434 = vpop.f32.mrf.mxu0
    %v1435 = vpop.f32.mrf.mxu0
    %v1436 = vadd.f32 %v288, %v1435
    %v1437 = vpop.f32.mrf.mxu0
    %1438 = vmatprep.mubr.bf16.mxu0 0
    %1439 = vmatmul.mubr.bf16.gmra.mxu0 %v974
    %v1440 = vpop.f32.mrf.mxu0
    %v1441 = vadd.f32 %v288, %v1440
    %v1442 = vpop.f32.mrf.mxu0
    %v1443 = vpop.f32.mrf.mxu0
    %v1444 = vadd.f32 %v288, %v1443
    %v1445 = vpop.f32.mrf.mxu0
    %1446 = vmatprep.mubr.bf16.mxu0 0
    %1447 = vmatmul.mubr.bf16.gmra.mxu0 %v977
    %v1448 = vpop.f32.mrf.mxu0
    %v1449 = vadd.f32 %v288, %v1448
    %v1450 = vpop.f32.mrf.mxu0
    %v1451 = vpop.f32.mrf.mxu0
    %v1452 = vadd.f32 %v288, %v1451
    %v1453 = vpop.f32.mrf.mxu0
    %1454 = vmatprep.mubr.bf16.mxu0 0
    %1455 = vmatmul.mubr.bf16.gmra.mxu0 %v980
    %v1456 = vpop.f32.mrf.mxu0
    %v1457 = vadd.f32 %v288, %v1456
    %v1458 = vpop.f32.mrf.mxu0
    %v1459 = vpop.f32.mrf.mxu0
    %v1460 = vadd.f32 %v288, %v1459
    %v1461 = vpop.f32.mrf.mxu0
    %1462 = vmatprep.mubr.bf16.mxu0 0
    %1463 = vmatmul.mubr.bf16.gmra.mxu0 %v983
    %v1464 = vpop.f32.mrf.mxu0
    %v1465 = vadd.f32 %v288, %v1464
    %v1466 = vpop.f32.mrf.mxu0
    %v1467 = vpop.f32.mrf.mxu0
    %v1468 = vadd.f32 %v288, %v1467
    %v1469 = vpop.f32.mrf.mxu0
    %1470 = vmatprep.mubr.bf16.mxu0 0
    %1471 = vmatmul.mubr.bf16.gmra.mxu0 %v986
    %v1472 = vpop.f32.mrf.mxu0
    %v1473 = vadd.f32 %v288, %v1472
    %v1474 = vpop.f32.mrf.mxu0
    %v1475 = vpop.f32.mrf.mxu0
    %v1476 = vadd.f32 %v288, %v1475
    %v1477 = vpop.f32.mrf.mxu0
    %1478 = vmatprep.mubr.bf16.mxu0 0
    %1479 = vmatmul.mubr.bf16.gmra.mxu0 %v989
    %v1480 = vpop.f32.mrf.mxu0
    %v1481 = vadd.f32 %v288, %v1480
    %v1482 = vpop.f32.mrf.mxu0
    %v1483 = vpop.f32.mrf.mxu0
    %v1484 = vadd.f32 %v288, %v1483
    %v1485 = vpop.f32.mrf.mxu0
    %1486 = vmatprep.mubr.bf16.mxu0 0
    %1487 = vmatmul.mubr.bf16.gmra.mxu0 %v992
    %v1488 = vpop.f32.mrf.mxu0
    %v1489 = vadd.f32 %v288, %v1488
    %v1490 = vpop.f32.mrf.mxu0
    %v1491 = vpop.f32.mrf.mxu0
    %v1492 = vadd.f32 %v288, %v1491
    %v1493 = vpop.f32.mrf.mxu0
    %1494 = vmatprep.mubr.bf16.mxu0 0
    %1495 = vmatmul.mubr.bf16.gmra.mxu0 %v995
    %v1496 = vpop.f32.mrf.mxu0
    %v1497 = vadd.f32 %v288, %v1496
    %v1498 = vpop.f32.mrf.mxu0
    %v1499 = vpop.f32.mrf.mxu0
    %v1500 = vadd.f32 %v288, %v1499
    %v1501 = vpop.f32.mrf.mxu0
    %1502 = vmatprep.mubr.bf16.mxu0 0
    %1503 = vmatmul.mubr.bf16.gmra.mxu0 %v998
    %v1504 = vpop.f32.mrf.mxu0
    %v1505 = vadd.f32 %v288, %v1504
    %v1506 = vpop.f32.mrf.mxu0
    %v1507 = vpop.f32.mrf.mxu0
    %v1508 = vadd.f32 %v288, %v1507
    %v1509 = vpop.f32.mrf.mxu0
    %1510 = vmatprep.mubr.bf16.mxu0 0
    %1511 = vmatmul.mubr.bf16.gmra.mxu0 %v1001
    %v1512 = vpop.f32.mrf.mxu0
    %v1513 = vadd.f32 %v288, %v1512
    %v1514 = vpop.f32.mrf.mxu0
    %v1515 = vpop.f32.mrf.mxu0
    %v1516 = vadd.f32 %v288, %v1515
    %v1517 = vpop.f32.mrf.mxu0
    %1518 = vmatprep.mubr.bf16.mxu0 0
    %1519 = vmatmul.mubr.bf16.gmra.mxu0 %v1004
    %v1520 = vpop.f32.mrf.mxu0
    %v1521 = vadd.f32 %v288, %v1520
    %v1522 = vpop.f32.mrf.mxu0
    %v1523 = vpop.f32.mrf.mxu0
    %v1524 = vadd.f32 %v288, %v1523
    %v1525 = vpop.f32.mrf.mxu0
    %1526 = vmatprep.mubr.bf16.mxu0 0
    %1527 = vmatmul.mubr.bf16.gmra.mxu0 %v1007
    %v1528 = vpop.f32.mrf.mxu0
    %v1529 = vadd.f32 %v288, %v1528
    %v1530 = vpop.f32.mrf.mxu0
    %v1531 = vpop.f32.mrf.mxu0
    %v1532 = vadd.f32 %v288, %v1531
    %v1533 = vpop.f32.mrf.mxu0
    %1534 = vmatprep.mubr.bf16.mxu0 0
    %1535 = vmatmul.mubr.bf16.gmra.mxu0 %v1010
    %v1536 = vpop.f32.mrf.mxu0
    %v1537 = vadd.f32 %v288, %v1536
    %v1538 = vpop.f32.mrf.mxu0
    %v1539 = vpop.f32.mrf.mxu0
    %v1540 = vadd.f32 %v288, %v1539
    %v1541 = vpop.f32.mrf.mxu0
    %1542 = vmatprep.mubr.bf16.mxu0 0
    %1543 = vmatmul.mubr.bf16.gmra.mxu0 %v1013
    %v1544 = vpop.f32.mrf.mxu0
    %v1545 = vadd.f32 %v288, %v1544
    %v1546 = vpop.f32.mrf.mxu0
    %v1547 = vpop.f32.mrf.mxu0
    %v1548 = vadd.f32 %v288, %v1547
    %v1549 = vpop.f32.mrf.mxu0
    %1550 = vmatprep.mubr.bf16.mxu0 0
    %1551 = vmatmul.mubr.bf16.gmra.mxu0 %v1016
    %v1552 = vpop.f32.mrf.mxu0
    %v1553 = vadd.f32 %v288, %v1552
    %v1554 = vpop.f32.mrf.mxu0
    %v1555 = vpop.f32.mrf.mxu0
    %v1556 = vadd.f32 %v288, %v1555
    %v1557 = vpop.f32.mrf.mxu0
    %1558 = vmatprep.mubr.bf16.mxu0 0
    %1559 = vmatmul.mubr.bf16.gmra.mxu0 %v1019
    %v1560 = vpop.f32.mrf.mxu0
    %v1561 = vadd.f32 %v288, %v1560
    %v1562 = vpop.f32.mrf.mxu0
    %v1563 = vpop.f32.mrf.mxu0
    %v1564 = vadd.f32 %v288, %v1563
    %v1565 = vpop.f32.mrf.mxu0
    %1566 = vmatprep.mubr.bf16.mxu0 0
    %1567 = vmatmul.mubr.bf16.gmra.mxu0 %v1022
    %v1568 = vpop.f32.mrf.mxu0
    %v1569 = vadd.f32 %v288, %v1568
    %v1570 = vpop.f32.mrf.mxu0
    %v1571 = vpop.f32.mrf.mxu0
    %v1572 = vadd.f32 %v288, %v1571
    %v1573 = vpop.f32.mrf.mxu0
    %1574 = vmatprep.mubr.bf16.mxu0 0
    %1575 = vmatmul.mubr.bf16.gmra.mxu0 %v1025
    %v1576 = vpop.f32.mrf.mxu0
    %v1577 = vadd.f32 %v288, %v1576
    %v1578 = vpop.f32.mrf.mxu0
    %v1579 = vpop.f32.mrf.mxu0
    %v1580 = vadd.f32 %v288, %v1579
    %v1581 = vpop.f32.mrf.mxu0
    %1582 = vmatprep.mubr.bf16.mxu0 0
    %1583 = vmatmul.mubr.bf16.gmra.mxu0 %v1028
    %v1584 = vpop.f32.mrf.mxu0
    %v1585 = vadd.f32 %v288, %v1584
    %v1586 = vpop.f32.mrf.mxu0
    %v1587 = vpop.f32.mrf.mxu0
    %v1588 = vadd.f32 %v288, %v1587
    %v1589 = vpop.f32.mrf.mxu0
    %1590 = vmatprep.mubr.bf16.mxu0 0
    %1591 = vmatmul.mubr.bf16.gmra.mxu0 %v1031
    %v1592 = vpop.f32.mrf.mxu0
    %v1593 = vadd.f32 %v288, %v1592
    %v1594 = vpop.f32.mrf.mxu0
    %v1595 = vpop.f32.mrf.mxu0
    %v1596 = vadd.f32 %v288, %v1595
    %v1597 = vpop.f32.mrf.mxu0
    %1598 = vmatprep.mubr.bf16.mxu0 0
    %1599 = vmatmul.mubr.bf16.gmra.mxu0 %v1034
    %v1600 = vpop.f32.mrf.mxu0
    %v1601 = vadd.f32 %v288, %v1600
    %v1602 = vpop.f32.mrf.mxu0
    %v1603 = vpop.f32.mrf.mxu0
    %v1604 = vadd.f32 %v288, %v1603
    %v1605 = vpop.f32.mrf.mxu0
    %1606 = vmatprep.mubr.bf16.mxu0 0
    %1607 = vmatmul.mubr.bf16.gmra.mxu0 %v1037
    %v1608 = vpop.f32.mrf.mxu0
    %v1609 = vadd.f32 %v288, %v1608
    %v1610 = vpop.f32.mrf.mxu0
    %v1611 = vpop.f32.mrf.mxu0
    %v1612 = vadd.f32 %v288, %v1611
    %v1613 = vpop.f32.mrf.mxu0
    %1614 = vmatprep.mubr.bf16.mxu0 0
    %1615 = vmatmul.mubr.bf16.gmra.mxu0 %v1040
    %v1616 = vpop.f32.mrf.mxu0
    %v1617 = vadd.f32 %v288, %v1616
    %v1618 = vpop.f32.mrf.mxu0
    %v1619 = vpop.f32.mrf.mxu0
    %v1620 = vadd.f32 %v288, %v1619
    %v1621 = vpop.f32.mrf.mxu0
    %1622 = vmatprep.mubr.bf16.mxu0 0
    %1623 = vmatmul.mubr.bf16.gmra.mxu0 %v1043
    %v1624 = vpop.f32.mrf.mxu0
    %v1625 = vadd.f32 %v288, %v1624
    %v1626 = vpop.f32.mrf.mxu0
    %v1627 = vpop.f32.mrf.mxu0
    %v1628 = vadd.f32 %v288, %v1627
    %v1629 = vpop.f32.mrf.mxu0
    %1630 = vmatprep.mubr.bf16.mxu0 0
    %1631 = vmatmul.mubr.bf16.gmra.mxu0 %v1046
    %v1632 = vpop.f32.mrf.mxu0
    %v1633 = vadd.f32 %v288, %v1632
    %v1634 = vpop.f32.mrf.mxu0
    %v1635 = vpop.f32.mrf.mxu0
    %v1636 = vadd.f32 %v288, %v1635
    %v1637 = vpop.f32.mrf.mxu0
    %1638 = vmatprep.mubr.bf16.mxu0 0
    %1639 = vmatmul.mubr.bf16.gmra.mxu0 %v1049
    %v1640 = vpop.f32.mrf.mxu0
    %v1641 = vadd.f32 %v288, %v1640
    %v1642 = vpop.f32.mrf.mxu0
    %v1643 = vpop.f32.mrf.mxu0
    %v1644 = vadd.f32 %v288, %v1643
    %v1645 = vpop.f32.mrf.mxu0
    %1646 = vmatprep.mubr.bf16.mxu0 0
    %1647 = vmatmul.mubr.bf16.gmra.mxu0 %v1052
    %v1648 = vpop.f32.mrf.mxu0
    %v1649 = vadd.f32 %v288, %v1648
    %v1650 = vpop.f32.mrf.mxu0
    %v1651 = vpop.f32.mrf.mxu0
    %v1652 = vadd.f32 %v288, %v1651
    %v1653 = vpop.f32.mrf.mxu0
    %1654 = vmatprep.mubr.bf16.mxu0 0
    %1655 = vmatmul.mubr.bf16.gmra.mxu0 %v1055
    %v1656 = vpop.f32.mrf.mxu0
    %v1657 = vadd.f32 %v288, %v1656
    %v1658 = vpop.f32.mrf.mxu0
    %v1659 = vpop.f32.mrf.mxu0
    %v1660 = vadd.f32 %v288, %v1659
    %v1661 = vpop.f32.mrf.mxu0
    %1662 = vmatprep.mubr.bf16.mxu0 0
    %1663 = vmatmul.mubr.bf16.gmra.mxu0 %v1058
    %v1664 = vpop.f32.mrf.mxu0
    %v1665 = vadd.f32 %v288, %v1664
    %v1666 = vpop.f32.mrf.mxu0
    %v1667 = vpop.f32.mrf.mxu0
    %v1668 = vadd.f32 %v288, %v1667
    %v1669 = vpop.f32.mrf.mxu0
    %1670 = vmatprep.mubr.bf16.mxu0 0
    %1671 = vmatmul.mubr.bf16.gmra.mxu0 %v1061
    %v1672 = vpop.f32.mrf.mxu0
    %v1673 = vadd.f32 %v288, %v1672
    %v1674 = vpop.f32.mrf.mxu0
    %v1675 = vpop.f32.mrf.mxu0
    %v1676 = vadd.f32 %v288, %v1675
    %v1677 = vpop.f32.mrf.mxu0
    %1678 = vmatprep.mubr.bf16.mxu0 0
    %1679 = vmatmul.mubr.bf16.gmra.mxu0 %v1064
    %v1680 = vpop.f32.mrf.mxu0
    %v1681 = vadd.f32 %v288, %v1680
    %v1682 = vpop.f32.mrf.mxu0
    %v1683 = vpop.f32.mrf.mxu0
    %v1684 = vadd.f32 %v288, %v1683
    %v1685 = vpop.f32.mrf.mxu0
    %1686 = vmatprep.mubr.bf16.mxu0 0
    %1687 = vmatmul.mubr.bf16.gmra.mxu0 %v1067
    %v1688 = vpop.f32.mrf.mxu0
    %v1689 = vadd.f32 %v288, %v1688
    %v1690 = vpop.f32.mrf.mxu0
    %v1691 = vpop.f32.mrf.mxu0
    %v1692 = vadd.f32 %v288, %v1691
    %v1693 = vpop.f32.mrf.mxu0
    %1694 = vmatprep.mubr.bf16.mxu0 0
    %1695 = vmatmul.mubr.bf16.gmra.mxu0 %v1070
    %v1696 = vpop.f32.mrf.mxu0
    %v1697 = vadd.f32 %v288, %v1696
    %v1698 = vpop.f32.mrf.mxu0
    %v1699 = vpop.f32.mrf.mxu0
    %v1700 = vadd.f32 %v288, %v1699
    %v1701 = vpop.f32.mrf.mxu0
    %1702 = vmatprep.mubr.bf16.mxu0 0
    %1703 = vmatmul.mubr.bf16.gmra.mxu0 %v1073
    %v1704 = vpop.f32.mrf.mxu0
    %v1705 = vadd.f32 %v288, %v1704
    %v1706 = vpop.f32.mrf.mxu0
    %v1707 = vpop.f32.mrf.mxu0
    %v1708 = vadd.f32 %v288, %v1707
    %v1709 = vpop.f32.mrf.mxu0
    %1710 = vmatprep.mubr.bf16.mxu0 0
    %1711 = vmatmul.mubr.bf16.gmra.mxu0 %v1076
    %v1712 = vpop.f32.mrf.mxu0
    %v1713 = vadd.f32 %v288, %v1712
    %v1714 = vpop.f32.mrf.mxu0
    %v1715 = vpop.f32.mrf.mxu0
    %v1716 = vadd.f32 %v288, %v1715
    %v1717 = vpop.f32.mrf.mxu0
    %1718 = vmatprep.mubr.bf16.mxu0 0
    %1719 = vmatmul.mubr.bf16.gmra.mxu0 %v1079
    %v1720 = vpop.f32.mrf.mxu0
    %v1721 = vadd.f32 %v288, %v1720
    %v1722 = vpop.f32.mrf.mxu0
    %v1723 = vpop.f32.mrf.mxu0
    %v1724 = vadd.f32 %v288, %v1723
    %v1725 = vpop.f32.mrf.mxu0
    %1726 = vmatprep.mubr.bf16.mxu0 0
    %1727 = vmatmul.mubr.bf16.gmra.mxu0 %v1082
    %v1728 = vpop.f32.mrf.mxu0
    %v1729 = vadd.f32 %v288, %v1728
    %v1730 = vpop.f32.mrf.mxu0
    %v1731 = vpop.f32.mrf.mxu0
    %v1732 = vadd.f32 %v288, %v1731
    %v1733 = vpop.f32.mrf.mxu0
    %1734 = vmatprep.mubr.bf16.mxu0 0
    %1735 = vmatmul.mubr.bf16.gmra.mxu0 %v1085
    %v1736 = vpop.f32.mrf.mxu0
    %v1737 = vadd.f32 %v288, %v1736
    %v1738 = vpop.f32.mrf.mxu0
    %v1739 = vpop.f32.mrf.mxu0
    %v1740 = vadd.f32 %v288, %v1739
    %v1741 = vpop.f32.mrf.mxu0
    %1742 = vmatprep.mubr.bf16.mxu0 0
    %1743 = vmatmul.mubr.bf16.gmra.mxu0 %v1088
    %v1744 = vpop.f32.mrf.mxu0
    %v1745 = vadd.f32 %v288, %v1744
    %v1746 = vpop.f32.mrf.mxu0
    %v1747 = vpop.f32.mrf.mxu0
    %v1748 = vadd.f32 %v288, %v1747
    %v1749 = vpop.f32.mrf.mxu0
    %1750 = vmatprep.mubr.bf16.mxu0 0
    %1751 = vmatmul.mubr.bf16.gmra.mxu0 %v1091
    %v1752 = vpop.f32.mrf.mxu0
    %v1753 = vadd.f32 %v288, %v1752
    %v1754 = vpop.f32.mrf.mxu0
    %v1755 = vpop.f32.mrf.mxu0
    %v1756 = vadd.f32 %v288, %v1755
    %v1757 = vpop.f32.mrf.mxu0
    %1758 = vmatprep.mubr.bf16.mxu0 0
    %1759 = vmatmul.mubr.bf16.gmra.mxu0 %v1094
    %v1760 = vpop.f32.mrf.mxu0
    %v1761 = vadd.f32 %v288, %v1760
    %v1762 = vpop.f32.mrf.mxu0
    %v1763 = vpop.f32.mrf.mxu0
    %v1764 = vadd.f32 %v288, %v1763
    %v1765 = vpop.f32.mrf.mxu0
    %1766 = vmatprep.mubr.bf16.mxu0 0
    %1767 = vmatmul.mubr.bf16.gmra.mxu0 %v1097
    %v1768 = vpop.f32.mrf.mxu0
    %v1769 = vadd.f32 %v288, %v1768
    %v1770 = vpop.f32.mrf.mxu0
    %v1771 = vpop.f32.mrf.mxu0
    %v1772 = vadd.f32 %v288, %v1771
    %v1773 = vpop.f32.mrf.mxu0
    %1774 = vmatprep.mubr.bf16.mxu0 0
    %1775 = vmatmul.mubr.bf16.gmra.mxu0 %v1100
    %v1776 = vpop.f32.mrf.mxu0
    %v1777 = vadd.f32 %v288, %v1776
    %v1778 = vpop.f32.mrf.mxu0
    %v1779 = vpop.f32.mrf.mxu0
    %v1780 = vadd.f32 %v288, %v1779
    %v1781 = vpop.f32.mrf.mxu0
    %1782 = vmatprep.mubr.bf16.mxu0 0
    %1783 = vmatmul.mubr.bf16.gmra.mxu0 %v1103
    %v1784 = vpop.f32.mrf.mxu0
    %v1785 = vadd.f32 %v288, %v1784
    %v1786 = vpop.f32.mrf.mxu0
    %v1787 = vpop.f32.mrf.mxu0
    %v1788 = vadd.f32 %v288, %v1787
    %v1789 = vpop.f32.mrf.mxu0
    %1790 = vmatprep.mubr.bf16.mxu0 0
    %1791 = vmatmul.mubr.bf16.gmra.mxu0 %v1106
    %v1792 = vpop.f32.mrf.mxu0
    %v1793 = vadd.f32 %v288, %v1792
    %v1794 = vpop.f32.mrf.mxu0
    %v1795 = vpop.f32.mrf.mxu0
    %v1796 = vadd.f32 %v288, %v1795
    %v1797 = vpop.f32.mrf.mxu0
    %1798 = vmatprep.mubr.bf16.mxu0 0
    %1799 = vmatmul.mubr.bf16.gmra.mxu0 %v1109
    %v1800 = vpop.f32.mrf.mxu0
    %v1801 = vadd.f32 %v288, %v1800
    %v1802 = vpop.f32.mrf.mxu0
    %v1803 = vpop.f32.mrf.mxu0
    %v1804 = vadd.f32 %v288, %v1803
    %v1805 = vpop.f32.mrf.mxu0
    %1806 = vmatprep.mubr.bf16.mxu0 0
    %1807 = vmatmul.mubr.bf16.gmra.mxu0 %v1112
    %v1808 = vpop.f32.mrf.mxu0
    %v1809 = vadd.f32 %v288, %v1808
    %v1810 = vpop.f32.mrf.mxu0
    %v1811 = vpop.f32.mrf.mxu0
    %v1812 = vadd.f32 %v288, %v1811
    %v1813 = vpop.f32.mrf.mxu0
    %1814 = vmatprep.mubr.bf16.mxu0 0
    %1815 = vmatmul.mubr.bf16.gmra.mxu0 %v1115
    %v1816 = vpop.f32.mrf.mxu0
    %v1817 = vadd.f32 %v288, %v1816
    %v1818 = vpop.f32.mrf.mxu0
    %v1819 = vpop.f32.mrf.mxu0
    %v1820 = vadd.f32 %v288, %v1819
    %v1821 = vpop.f32.mrf.mxu0
    %1822 = vmatprep.mubr.bf16.mxu0 0
    %1823 = vmatmul.mubr.bf16.gmra.mxu0 %v1118
    %v1824 = vpop.f32.mrf.mxu0
    %v1825 = vadd.f32 %v288, %v1824
    %v1826 = vpop.f32.mrf.mxu0
    %v1827 = vpop.f32.mrf.mxu0
    %v1828 = vadd.f32 %v288, %v1827
    %v1829 = vpop.f32.mrf.mxu0
    %1830 = vmatprep.mubr.bf16.mxu0 0
    %1831 = vmatmul.mubr.bf16.gmra.mxu0 %v1121
    %v1832 = vpop.f32.mrf.mxu0
    %v1833 = vadd.f32 %v288, %v1832
    %v1834 = vpop.f32.mrf.mxu0
    %v1835 = vpop.f32.mrf.mxu0
    %v1836 = vadd.f32 %v288, %v1835
    %v1837 = vpop.f32.mrf.mxu0
    %1838 = vmatprep.mubr.bf16.mxu0 0
    %1839 = vmatmul.mubr.bf16.gmra.mxu0 %v1124
    %v1840 = vpop.f32.mrf.mxu0
    %v1841 = vadd.f32 %v288, %v1840
    %v1842 = vpop.f32.mrf.mxu0
    %v1843 = vpop.f32.mrf.mxu0
    %v1844 = vadd.f32 %v288, %v1843
    %v1845 = vpop.f32.mrf.mxu0
    %1846 = vmatprep.mubr.bf16.mxu0 0
    %1847 = vmatmul.mubr.bf16.gmra.mxu0 %v1127
    %v1848 = vpop.f32.mrf.mxu0
    %v1849 = vadd.f32 %v288, %v1848
    %v1850 = vpop.f32.mrf.mxu0
    %v1851 = vpop.f32.mrf.mxu0
    %v1852 = vadd.f32 %v288, %v1851
    %v1853 = vpop.f32.mrf.mxu0
    %1854 = vmatprep.mubr.bf16.mxu0 0
    %1855 = vmatmul.mubr.bf16.gmra.mxu0 %v1130
    %v1856 = vpop.f32.mrf.mxu0
    %v1857 = vadd.f32 %v288, %v1856
    %v1858 = vpop.f32.mrf.mxu0
    %v1859 = vpop.f32.mrf.mxu0
    %v1860 = vadd.f32 %v288, %v1859
    %v1861 = vpop.f32.mrf.mxu0
    %1862 = vmatprep.mubr.bf16.mxu0 0
    %1863 = vmatmul.mubr.bf16.gmra.mxu0 %v1133
    %v1864 = vpop.f32.mrf.mxu0
    %v1865 = vadd.f32 %v288, %v1864
    %v1866 = vpop.f32.mrf.mxu0
    %v1867 = vpop.f32.mrf.mxu0
    %v1868 = vadd.f32 %v288, %v1867
    %v1869 = vpop.f32.mrf.mxu0
    %1870 = vmatprep.mubr.bf16.mxu0 0
    %1871 = vmatmul.mubr.bf16.gmra.mxu0 %v1136
    %v1872 = vpop.f32.mrf.mxu0
    %v1873 = vadd.f32 %v288, %v1872
    %v1874 = vpop.f32.mrf.mxu0
    %v1875 = vpop.f32.mrf.mxu0
    %v1876 = vadd.f32 %v288, %v1875
    %v1877 = vpop.f32.mrf.mxu0
    %1878 = vmatprep.mubr.bf16.mxu0 0
    %1879 = vmatmul.mubr.bf16.gmra.mxu0 %v1139
    %v1880 = vpop.f32.mrf.mxu0
    %v1881 = vadd.f32 %v288, %v1880
    %v1882 = vpop.f32.mrf.mxu0
    %v1883 = vpop.f32.mrf.mxu0
    %v1884 = vadd.f32 %v288, %v1883
    %v1885 = vpop.f32.mrf.mxu0
    %1886 = vmatprep.mubr.bf16.mxu0 0
    %1887 = vmatmul.mubr.bf16.gmra.mxu0 %v1142
    %v1888 = vpop.f32.mrf.mxu0
    %v1889 = vadd.f32 %v288, %v1888
    %v1890 = vpop.f32.mrf.mxu0
    %v1891 = vpop.f32.mrf.mxu0
    %v1892 = vadd.f32 %v288, %v1891
    %v1893 = vpop.f32.mrf.mxu0
    %1894 = vmatprep.mubr.bf16.mxu0 0
    %1895 = vmatmul.mubr.bf16.gmra.mxu0 %v1145
    %v1896 = vpop.f32.mrf.mxu0
    %v1897 = vadd.f32 %v288, %v1896
    %v1898 = vpop.f32.mrf.mxu0
    %v1899 = vpop.f32.mrf.mxu0
    %v1900 = vadd.f32 %v288, %v1899
    %v1901 = vpop.f32.mrf.mxu0
    %1902 = vmatprep.mubr.bf16.mxu0 0
    %1903 = vmatmul.mubr.bf16.gmra.mxu0 %v1148
    %v1904 = vpop.f32.mrf.mxu0
    %v1905 = vadd.f32 %v288, %v1904
    %v1906 = vpop.f32.mrf.mxu0
    %v1907 = vpop.f32.mrf.mxu0
    %v1908 = vadd.f32 %v288, %v1907
    %v1909 = vpop.f32.mrf.mxu0
    %1910 = vmatprep.mubr.bf16.mxu0 0
    %1911 = vmatmul.mubr.bf16.gmra.mxu0 %v1151
    %v1912 = vpop.f32.mrf.mxu0
    %v1913 = vadd.f32 %v288, %v1912
    %v1914 = vpop.f32.mrf.mxu0
    %v1915 = vpop.f32.mrf.mxu0
    %v1916 = vadd.f32 %v288, %v1915
    %v1917 = vpop.f32.mrf.mxu0
    %1918 = vmatprep.mubr.bf16.mxu0 0
    %1919 = vmatmul.mubr.bf16.gmra.mxu0 %v1154
    %v1920 = vpop.f32.mrf.mxu0
    %v1921 = vadd.f32 %v288, %v1920
    %v1922 = vpop.f32.mrf.mxu0
    %v1923 = vpop.f32.mrf.mxu0
    %v1924 = vadd.f32 %v288, %v1923
    %v1925 = vpop.f32.mrf.mxu0
    %1926 = vmatprep.mubr.bf16.mxu0 0
    %1927 = vmatmul.mubr.bf16.gmra.mxu0 %v1157
    %v1928 = vpop.f32.mrf.mxu0
    %v1929 = vadd.f32 %v288, %v1928
    %v1930 = vpop.f32.mrf.mxu0
    %v1931 = vpop.f32.mrf.mxu0
    %v1932 = vadd.f32 %v288, %v1931
    %v1933 = vpop.f32.mrf.mxu0
    %1934 = vmatprep.mubr.bf16.mxu0 0
    %1935 = vmatmul.mubr.bf16.gmra.mxu0 %v1160
    %v1936 = vpop.f32.mrf.mxu0
    %v1937 = vadd.f32 %v288, %v1936
    %v1938 = vpop.f32.mrf.mxu0
    %v1939 = vpop.f32.mrf.mxu0
    %v1940 = vadd.f32 %v288, %v1939
    %v1941 = vpop.f32.mrf.mxu0
    %1942 = vmatprep.mubr.bf16.mxu0 0
    %1943 = vmatmul.mubr.bf16.gmra.mxu0 %v1163
    %v1944 = vpop.f32.mrf.mxu0
    %v1945 = vadd.f32 %v288, %v1944
    %v1946 = vpop.f32.mrf.mxu0
    %v1947 = vpop.f32.mrf.mxu0
    %v1948 = vadd.f32 %v288, %v1947
    %v1949 = vpop.f32.mrf.mxu0
    %1950 = vmatprep.mubr.bf16.mxu0 0
    %1951 = vmatmul.mubr.bf16.gmra.mxu0 %v1166
    %v1952 = vpop.f32.mrf.mxu0
    %v1953 = vadd.f32 %v288, %v1952
    %v1954 = vpop.f32.mrf.mxu0
    %v1955 = vpop.f32.mrf.mxu0
    %v1956 = vadd.f32 %v288, %v1955
    %v1957 = vpop.f32.mrf.mxu0
    %1958 = vmatprep.mubr.bf16.mxu0 0
    %1959 = vmatmul.mubr.bf16.gmra.mxu0 %v1169
    %v1960 = vpop.f32.mrf.mxu0
    %v1961 = vadd.f32 %v288, %v1960
    %v1962 = vpop.f32.mrf.mxu0
    %v1963 = vpop.f32.mrf.mxu0
    %v1964 = vadd.f32 %v288, %v1963
    %v1965 = vpop.f32.mrf.mxu0
    %1966 = vmatprep.mubr.bf16.mxu0 0
    %1967 = vmatmul.mubr.bf16.gmra.mxu0 %v1172
    %v1968 = vpop.f32.mrf.mxu0
    %v1969 = vadd.f32 %v288, %v1968
    %v1970 = vpop.f32.mrf.mxu0
    %v1971 = vpop.f32.mrf.mxu0
    %v1972 = vadd.f32 %v288, %v1971
    %v1973 = vpop.f32.mrf.mxu0
    %1974 = vmatprep.mubr.bf16.mxu0 0
    %1975 = vmatmul.mubr.bf16.gmra.mxu0 %v1175
    %v1976 = vpop.f32.mrf.mxu0
    %v1977 = vadd.f32 %v288, %v1976
    %v1978 = vpop.f32.mrf.mxu0
    %v1979 = vpop.f32.mrf.mxu0
    %v1980 = vadd.f32 %v288, %v1979
    %v1981 = vpop.f32.mrf.mxu0
    %1982 = vmatprep.mubr.bf16.mxu0 0
    %1983 = vmatmul.mubr.bf16.gmra.mxu0 %v1178
    %v1984 = vpop.f32.mrf.mxu0
    %v1985 = vadd.f32 %v288, %v1984
    %v1986 = vpop.f32.mrf.mxu0
    %v1987 = vpop.f32.mrf.mxu0
    %v1988 = vadd.f32 %v288, %v1987
    %v1989 = vpop.f32.mrf.mxu0
    %1990 = vmatprep.mubr.bf16.mxu0 0
    %1991 = vmatmul.mubr.bf16.gmra.mxu0 %v1181
    %v1992 = vpop.f32.mrf.mxu0
    %v1993 = vadd.f32 %v288, %v1992
    %v1994 = vpop.f32.mrf.mxu0
    %v1995 = vpop.f32.mrf.mxu0
    %v1996 = vadd.f32 %v288, %v1995
    %v1997 = vpop.f32.mrf.mxu0
    %1998 = vmatprep.mubr.bf16.mxu0 0
    %1999 = vmatmul.mubr.bf16.gmra.mxu0 %v1184
    %v2000 = vpop.f32.mrf.mxu0
    %v2001 = vadd.f32 %v288, %v2000
    %v2002 = vpop.f32.mrf.mxu0
    %v2003 = vpop.f32.mrf.mxu0
    %v2004 = vadd.f32 %v288, %v2003
    %v2005 = vpop.f32.mrf.mxu0
    %2006 = vmatprep.mubr.bf16.mxu0 0
    %2007 = vmatmul.mubr.bf16.gmra.mxu0 %v1187
    %v2008 = vpop.f32.mrf.mxu0
    %v2009 = vadd.f32 %v288, %v2008
    %v2010 = vpop.f32.mrf.mxu0
    %v2011 = vpop.f32.mrf.mxu0
    %v2012 = vadd.f32 %v288, %v2011
    %v2013 = vpop.f32.mrf.mxu0
    %2014 = vmatprep.mubr.bf16.mxu0 0
    %2015 = vmatmul.mubr.bf16.gmra.mxu0 %v1190
    %v2016 = vpop.f32.mrf.mxu0
    %v2017 = vadd.f32 %v288, %v2016
    %v2018 = vpop.f32.mrf.mxu0
    %v2019 = vpop.f32.mrf.mxu0
    %v2020 = vadd.f32 %v288, %v2019
    %v2021 = vpop.f32.mrf.mxu0
    %2022 = vmatprep.mubr.bf16.mxu0 0
    %2023 = vmatmul.mubr.bf16.gmra.mxu0 %v1193
    %v2024 = vpop.f32.mrf.mxu0
    %v2025 = vadd.f32 %v288, %v2024
    %v2026 = vpop.f32.mrf.mxu0
    %v2027 = vpop.f32.mrf.mxu0
    %v2028 = vadd.f32 %v288, %v2027
    %v2029 = vpop.f32.mrf.mxu0
    %2030 = vmatprep.mubr.bf16.mxu0 0
    %2031 = vmatmul.mubr.bf16.gmra.mxu0 %v1196
    %v2032 = vpop.f32.mrf.mxu0
    %v2033 = vadd.f32 %v288, %v2032
    %v2034 = vpop.f32.mrf.mxu0
    %v2035 = vpop.f32.mrf.mxu0
    %v2036 = vadd.f32 %v288, %v2035
    %v2037 = vpop.f32.mrf.mxu0
    %2038 = vmatprep.mubr.bf16.mxu0 0
    %2039 = vmatmul.mubr.bf16.gmra.mxu0 %v1199
    %v2040 = vpop.f32.mrf.mxu0
    %v2041 = vadd.f32 %v288, %v2040
    %v2042 = vpop.f32.mrf.mxu0
    %v2043 = vpop.f32.mrf.mxu0
    %v2044 = vadd.f32 %v288, %v2043
    %v2045 = vpop.f32.mrf.mxu0
    %2046 = vmatprep.mubr.bf16.mxu0 0
    %2047 = vmatmul.mubr.bf16.gmra.mxu0 %v1202
    %v2048 = vpop.f32.mrf.mxu0
    %v2049 = vadd.f32 %v288, %v2048
    %v2050 = vpop.f32.mrf.mxu0
    %v2051 = vpop.f32.mrf.mxu0
    %v2052 = vadd.f32 %v288, %v2051
    %v2053 = vpop.f32.mrf.mxu0
    %2054 = vmatprep.mubr.bf16.mxu0 0
    %2055 = vmatmul.mubr.bf16.gmra.mxu0 %v1205
    %v2056 = vpop.f32.mrf.mxu0
    %v2057 = vadd.f32 %v288, %v2056
    %v2058 = vpop.f32.mrf.mxu0
    %v2059 = vpop.f32.mrf.mxu0
    %v2060 = vadd.f32 %v288, %v2059
    %v2061 = vpop.f32.mrf.mxu0
    %2062 = vmatprep.mubr.bf16.mxu0 0
    %2063 = vmatmul.mubr.bf16.gmra.mxu0 %v1208
    %v2064 = vpop.f32.mrf.mxu0
    %v2065 = vadd.f32 %v288, %v2064
    %v2066 = vpop.f32.mrf.mxu0
    %v2067 = vpop.f32.mrf.mxu0
    %v2068 = vadd.f32 %v288, %v2067
    %v2069 = vpop.f32.mrf.mxu0
    %2070 = vmatprep.mubr.bf16.mxu0 0
    %2071 = vmatmul.mubr.bf16.gmra.mxu0 %v1211
    %v2072 = vpop.f32.mrf.mxu0
    %v2073 = vadd.f32 %v288, %v2072
    %v2074 = vpop.f32.mrf.mxu0
    %v2075 = vpop.f32.mrf.mxu0
    %v2076 = vadd.f32 %v288, %v2075
    %v2077 = vpop.f32.mrf.mxu0
    %2078 = vmatprep.mubr.bf16.mxu0 0
    %2079 = vmatmul.mubr.bf16.gmra.mxu0 %v1214
    %v2080 = vpop.f32.mrf.mxu0
    %v2081 = vadd.f32 %v288, %v2080
    %v2082 = vpop.f32.mrf.mxu0
    %v2083 = vpop.f32.mrf.mxu0
    %v2084 = vadd.f32 %v288, %v2083
    %v2085 = vpop.f32.mrf.mxu0
    %2086 = vmatprep.mubr.bf16.mxu0 0
    %2087 = vmatmul.mubr.bf16.gmra.mxu0 %v1217
    %v2088 = vpop.f32.mrf.mxu0
    %v2089 = vadd.f32 %v288, %v2088
    %v2090 = vpop.f32.mrf.mxu0
    %v2091 = vpop.f32.mrf.mxu0
    %v2092 = vadd.f32 %v288, %v2091
    %v2093 = vpop.f32.mrf.mxu0
    %2094 = vmatprep.mubr.bf16.mxu0 0
    %2095 = vmatmul.mubr.bf16.gmra.mxu0 %v1220
    %v2096 = vpop.f32.mrf.mxu0
    %v2097 = vadd.f32 %v288, %v2096
    %v2098 = vpop.f32.mrf.mxu0
    %v2099 = vpop.f32.mrf.mxu0
    %v2100 = vadd.f32 %v288, %v2099
    %v2101 = vpop.f32.mrf.mxu0
    %2102 = vmatprep.mubr.bf16.mxu0 0
    %2103 = vmatmul.mubr.bf16.gmra.mxu0 %v1223
    %v2104 = vpop.f32.mrf.mxu0
    %v2105 = vadd.f32 %v288, %v2104
    %v2106 = vpop.f32.mrf.mxu0
    %v2107 = vpop.f32.mrf.mxu0
    %v2108 = vadd.f32 %v288, %v2107
    %v2109 = vpop.f32.mrf.mxu0
    %2110 = vmatprep.mubr.bf16.mxu0 0
    %2111 = vmatmul.mubr.bf16.gmra.mxu0 %v1226
    %v2112 = vpop.f32.mrf.mxu0
    %v2113 = vadd.f32 %v288, %v2112
    %v2114 = vpop.f32.mrf.mxu0
    %v2115 = vpop.f32.mrf.mxu0
    %v2116 = vadd.f32 %v288, %v2115
    %v2117 = vpop.f32.mrf.mxu0
    %2118 = vmatprep.mubr.bf16.mxu0 0
    %2119 = vmatmul.mubr.bf16.gmra.mxu0 %v1229
    %v2120 = vpop.f32.mrf.mxu0
    %v2121 = vadd.f32 %v288, %v2120
    %v2122 = vpop.f32.mrf.mxu0
    %v2123 = vpop.f32.mrf.mxu0
    %v2124 = vadd.f32 %v288, %v2123
    %v2125 = vpop.f32.mrf.mxu0
    %2126 = vmatprep.mubr.bf16.mxu0 0
    %2127 = vmatmul.mubr.bf16.gmra.mxu0 %v1232
    %v2128 = vpop.f32.mrf.mxu0
    %v2129 = vadd.f32 %v288, %v2128
    %v2130 = vpop.f32.mrf.mxu0
    %v2131 = vpop.f32.mrf.mxu0
    %v2132 = vadd.f32 %v288, %v2131
    %v2133 = vpop.f32.mrf.mxu0
    %2134 = vmatprep.mubr.bf16.mxu0 0
    %2135 = vmatmul.mubr.bf16.gmra.mxu0 %v1235
    %v2136 = vpop.f32.mrf.mxu0
    %v2137 = vadd.f32 %v288, %v2136
    %v2138 = vpop.f32.mrf.mxu0
    %v2139 = vpop.f32.mrf.mxu0
    %v2140 = vadd.f32 %v288, %v2139
    %v2141 = vpop.f32.mrf.mxu0
    %2142 = vmatprep.mubr.bf16.mxu0 0
    %2143 = vmatmul.mubr.bf16.gmra.mxu0 %v1238
    %v2144 = vpop.f32.mrf.mxu0
    %v2145 = vadd.f32 %v288, %v2144
    %v2146 = vpop.f32.mrf.mxu0
    %v2147 = vpop.f32.mrf.mxu0
    %v2148 = vadd.f32 %v288, %v2147
    %v2149 = vpop.f32.mrf.mxu0
    %2150 = vmatprep.mubr.bf16.mxu0 0
    %2151 = vmatmul.mubr.bf16.gmra.mxu0 %v1241
    %v2152 = vpop.f32.mrf.mxu0
    %v2153 = vadd.f32 %v288, %v2152
    %v2154 = vpop.f32.mrf.mxu0
    %v2155 = vpop.f32.mrf.mxu0
    %v2156 = vadd.f32 %v288, %v2155
    %v2157 = vpop.f32.mrf.mxu0
    %2158 = vmatprep.mubr.bf16.mxu0 0
    %2159 = vmatmul.mubr.bf16.gmra.mxu0 %v1244
    %v2160 = vpop.f32.mrf.mxu0
    %v2161 = vadd.f32 %v288, %v2160
    %v2162 = vpop.f32.mrf.mxu0
    %v2163 = vpop.f32.mrf.mxu0
    %v2164 = vadd.f32 %v288, %v2163
    %v2165 = vpop.f32.mrf.mxu0
    %2166 = vmatprep.mubr.bf16.mxu0 0
    %2167 = vmatmul.mubr.bf16.gmra.mxu0 %v1247
    %v2168 = vpop.f32.mrf.mxu0
    %v2169 = vadd.f32 %v288, %v2168
    %v2170 = vpop.f32.mrf.mxu0
    %v2171 = vpop.f32.mrf.mxu0
    %v2172 = vadd.f32 %v288, %v2171
    %v2173 = vpop.f32.mrf.mxu0
    %2174 = vmatprep.mubr.bf16.mxu0 0
    %2175 = vmatmul.mubr.bf16.gmra.mxu0 %v1250
    %v2176 = vpop.f32.mrf.mxu0
    %v2177 = vadd.f32 %v288, %v2176
    %v2178 = vpop.f32.mrf.mxu0
    %v2179 = vpop.f32.mrf.mxu0
    %v2180 = vadd.f32 %v288, %v2179
    %v2181 = vpop.f32.mrf.mxu0
    %2182 = vmatprep.mubr.bf16.mxu0 0
    %2183 = vmatmul.mubr.bf16.gmra.mxu0 %v1253
    %v2184 = vpop.f32.mrf.mxu0
    %v2185 = vadd.f32 %v288, %v2184
    %v2186 = vpop.f32.mrf.mxu0
    %v2187 = vpop.f32.mrf.mxu0
    %v2188 = vadd.f32 %v288, %v2187
    %v2189 = vpop.f32.mrf.mxu0
    %2190 = vmatprep.mubr.bf16.mxu0 0
    %2191 = vmatmul.mubr.bf16.gmra.mxu0 %v1256
    %v2192 = vpop.f32.mrf.mxu0
    %v2193 = vadd.f32 %v288, %v2192
    %v2194 = vpop.f32.mrf.mxu0
    %v2195 = vpop.f32.mrf.mxu0
    %v2196 = vadd.f32 %v288, %v2195
    %v2197 = vpop.f32.mrf.mxu0
    %2198 = vmatprep.mubr.bf16.mxu0 0
    %2199 = vmatmul.mubr.bf16.gmra.mxu0 %v1259
    %v2200 = vpop.f32.mrf.mxu0
    %v2201 = vadd.f32 %v288, %v2200
    %v2202 = vpop.f32.mrf.mxu0
    %v2203 = vpop.f32.mrf.mxu0
    %v2204 = vadd.f32 %v288, %v2203
    %v2205 = vpop.f32.mrf.mxu0
    %2206 = vmatprep.mubr.bf16.mxu0 0
    %2207 = vmatmul.mubr.bf16.gmra.mxu0 %v1262
    %v2208 = vpop.f32.mrf.mxu0
    %v2209 = vadd.f32 %v288, %v2208
    %v2210 = vpop.f32.mrf.mxu0
    %v2211 = vpop.f32.mrf.mxu0
    %v2212 = vadd.f32 %v288, %v2211
    %v2213 = vpop.f32.mrf.mxu0
    %2214 = vmatprep.mubr.bf16.mxu0 0
    %2215 = vmatmul.mubr.bf16.gmra.mxu0 %v1265
    %v2216 = vpop.f32.mrf.mxu0
    %v2217 = vadd.f32 %v288, %v2216
    %v2218 = vpop.f32.mrf.mxu0
    %v2219 = vpop.f32.mrf.mxu0
    %v2220 = vadd.f32 %v288, %v2219
    %v2221 = vpop.f32.mrf.mxu0
    %2222 = vmatprep.mubr.bf16.mxu0 0
    %2223 = vmatmul.mubr.bf16.gmra.mxu0 %v1268
    %v2224 = vpop.f32.mrf.mxu0
    %v2225 = vadd.f32 %v288, %v2224
    %v2226 = vpop.f32.mrf.mxu0
    %v2227 = vpop.f32.mrf.mxu0
    %v2228 = vadd.f32 %v288, %v2227
    %v2229 = vpop.f32.mrf.mxu0
    %2230 = vmatprep.mubr.bf16.mxu0 0
    %2231 = vmatmul.mubr.bf16.gmra.mxu0 %v1271
    %v2232 = vpop.f32.mrf.mxu0
    %v2233 = vadd.f32 %v288, %v2232
    %v2234 = vpop.f32.mrf.mxu0
    %v2235 = vpop.f32.mrf.mxu0
    %v2236 = vadd.f32 %v288, %v2235
    %v2237 = vpop.f32.mrf.mxu0
    %2238 = vmatprep.mubr.bf16.mxu0 0
    %2239 = vmatmul.mubr.bf16.gmra.mxu0 %v1274
    %v2240 = vpop.f32.mrf.mxu0
    %v2241 = vadd.f32 %v288, %v2240
    %v2242 = vpop.f32.mrf.mxu0
    %v2243 = vpop.f32.mrf.mxu0
    %v2244 = vadd.f32 %v288, %v2243
    %v2245 = vpop.f32.mrf.mxu0
    %2246 = vmatprep.mubr.bf16.mxu0 0
    %2247 = vmatmul.mubr.bf16.gmra.mxu0 %v1277
    %v2248 = vpop.f32.mrf.mxu0
    %v2249 = vadd.f32 %v288, %v2248
    %v2250 = vpop.f32.mrf.mxu0
    %v2251 = vpop.f32.mrf.mxu0
    %v2252 = vadd.f32 %v288, %v2251
    %v2253 = vpop.f32.mrf.mxu0
    %2254 = vmatprep.mubr.bf16.mxu0 0
    %2255 = vmatmul.mubr.bf16.gmra.mxu0 %v1280
    %v2256 = vpop.f32.mrf.mxu0
    %v2257 = vadd.f32 %v288, %v2256
    %v2258 = vpop.f32.mrf.mxu0
    %v2259 = vpop.f32.mrf.mxu0
    %v2260 = vadd.f32 %v288, %v2259
    %v2261 = vpop.f32.mrf.mxu0
    %2262 = vmatprep.mubr.bf16.mxu0 0
    %2263 = vmatmul.mubr.bf16.gmra.mxu0 %v1283
    %v2264 = vpop.f32.mrf.mxu0
    %v2265 = vadd.f32 %v288, %v2264
    %v2266 = vpop.f32.mrf.mxu0
    %v2267 = vpop.f32.mrf.mxu0
    %v2268 = vadd.f32 %v288, %v2267
    %v2269 = vpop.f32.mrf.mxu0
    %2270 = vmatprep.mubr.bf16.mxu0 0
    %2271 = vmatmul.mubr.bf16.gmra.mxu0 %v1286
    %v2272 = vpop.f32.mrf.mxu0
    %v2273 = vadd.f32 %v288, %v2272
    %v2274 = vpop.f32.mrf.mxu0
    %v2275 = vpop.f32.mrf.mxu0
    %v2276 = vadd.f32 %v288, %v2275
    %v2277 = vpop.f32.mrf.mxu0
    %2278 = vmatprep.mubr.bf16.mxu0 0
    %2279 = vmatmul.mubr.bf16.gmra.mxu0 %v1289
    %v2280 = vpop.f32.mrf.mxu0
    %v2281 = vadd.f32 %v288, %v2280
    %v2282 = vpop.f32.mrf.mxu0
    %v2283 = vpop.f32.mrf.mxu0
    %v2284 = vadd.f32 %v288, %v2283
    %v2285 = vpop.f32.mrf.mxu0
    %2286 = vmatprep.mubr.bf16.mxu0 0
    %2287 = vmatmul.mubr.bf16.gmra.mxu0 %v1292
    %v2288 = vpop.f32.mrf.mxu0
    %v2289 = vadd.f32 %v288, %v2288
    %v2290 = vpop.f32.mrf.mxu0
    %v2291 = vpop.f32.mrf.mxu0
    %v2292 = vadd.f32 %v288, %v2291
    %v2293 = vpop.f32.mrf.mxu0
    %2294 = vmatprep.mubr.bf16.mxu0 0
    %2295 = vmatmul.mubr.bf16.gmra.mxu0 %v1295
    %v2296 = vpop.f32.mrf.mxu0
    %v2297 = vadd.f32 %v288, %v2296
    %v2298 = vpop.f32.mrf.mxu0
    %v2299 = vpop.f32.mrf.mxu0
    %v2300 = vadd.f32 %v288, %v2299
    %v2301 = vpop.f32.mrf.mxu0
    %2302 = vmatprep.mubr.bf16.mxu0 0
    %2303 = vmatmul.mubr.bf16.gmra.mxu0 %v1298
    %v2304 = vpop.f32.mrf.mxu0
    %v2305 = vadd.f32 %v288, %v2304
    %v2306 = vpop.f32.mrf.mxu0
    %v2307 = vpop.f32.mrf.mxu0
    %v2308 = vadd.f32 %v288, %v2307
    %v2309 = vpop.f32.mrf.mxu0
    %2310 = vmatprep.mubr.bf16.mxu0 0
    %2311 = vmatmul.mubr.bf16.gmra.mxu0 %v1301
    %v2312 = vpop.f32.mrf.mxu0
    %v2313 = vadd.f32 %v288, %v2312
    %v2314 = vpop.f32.mrf.mxu0
    %v2315 = vpop.f32.mrf.mxu0
    %v2316 = vadd.f32 %v288, %v2315
    %v2317 = vpop.f32.mrf.mxu0
    %2318 = vmatprep.mubr.bf16.mxu0 0
    %2319 = vmatmul.mubr.bf16.gmra.mxu0 %v1304
    %v2320 = vpop.f32.mrf.mxu0
    %v2321 = vadd.f32 %v288, %v2320
    %v2322 = vpop.f32.mrf.mxu0
    %v2323 = vpop.f32.mrf.mxu0
    %v2324 = vadd.f32 %v288, %v2323
    %v2325 = vpop.f32.mrf.mxu0
    %2326 = vmatprep.mubr.bf16.mxu0 0
    %2327 = vmatmul.mubr.bf16.gmra.mxu0 %v1307
    %v2328 = vpop.f32.mrf.mxu0
    %v2329 = vadd.f32 %v288, %v2328
    %v2330 = vpop.f32.mrf.mxu0
    %v2331 = vpop.f32.mrf.mxu0
    %v2332 = vadd.f32 %v288, %v2331
    %v2333 = vpop.f32.mrf.mxu0
    %2334 = vmatprep.mubr.bf16.mxu0 0
    %2335 = vmatmul.mubr.bf16.gmra.mxu0 %v1310
    %v2336 = vpop.f32.mrf.mxu0
    %v2337 = vadd.f32 %v288, %v2336
    %v2338 = vpop.f32.mrf.mxu0
    %v2339 = vpop.f32.mrf.mxu0
    %v2340 = vadd.f32 %v288, %v2339
    %v2341 = vpop.f32.mrf.mxu0
    %2342 = vmatprep.mubr.bf16.mxu0 0
    %2343 = vmatmul.mubr.bf16.gmra.mxu0 %v1313
    %v2344 = vpop.f32.mrf.mxu0
    %v2345 = vadd.f32 %v288, %v2344
    %v2346 = vpop.f32.mrf.mxu0
    %v2347 = vpop.f32.mrf.mxu0
    %v2348 = vadd.f32 %v288, %v2347
    %v2349 = vpop.f32.mrf.mxu0
    %2350 = vmatprep.mubr.bf16.mxu0 0
    %2351 = vmatmul.mubr.bf16.gmra.mxu0 %v1316
    %v2352 = vpop.f32.mrf.mxu0
    %v2353 = vadd.f32 %v288, %v2352
    %v2354 = vpop.f32.mrf.mxu0
    %v2355 = vpop.f32.mrf.mxu0
    %v2356 = vadd.f32 %v288, %v2355
    %v2357 = vpop.f32.mrf.mxu0
    %2358 = vmatprep.mubr.bf16.mxu0 0
    %2359 = vmatmul.mubr.bf16.gmra.mxu0 %v1319
    %v2360 = vpop.f32.mrf.mxu0
    %v2361 = vadd.f32 %v288, %v2360
    %v2362 = vpop.f32.mrf.mxu0
    %v2363 = vpop.f32.mrf.mxu0
    %v2364 = vadd.f32 %v288, %v2363
    %v2365 = vpop.f32.mrf.mxu0
    %2366 = vmatprep.mubr.bf16.mxu0 0
    %2367 = vmatmul.mubr.bf16.gmra.mxu0 %v1322
    %v2368 = vpop.f32.mrf.mxu0
    %v2369 = vadd.f32 %v288, %v2368
    %v2370 = vpop.f32.mrf.mxu0
    %v2371 = vpop.f32.mrf.mxu0
    %v2372 = vadd.f32 %v288, %v2371
    %v2373 = vpop.f32.mrf.mxu0
    %2374 = vmatprep.mubr.bf16.mxu0 0
    %2375 = vmatmul.mubr.bf16.gmra.mxu0 %v1325
    %v2376 = vpop.f32.mrf.mxu0
    %v2377 = vadd.f32 %v288, %v2376
    %v2378 = vpop.f32.mrf.mxu0
    %v2379 = vpop.f32.mrf.mxu0
    %v2380 = vadd.f32 %v288, %v2379
    %v2381 = vpop.f32.mrf.mxu0
    %2382 = vmatprep.mubr.bf16.mxu0 0
    %2383 = vmatmul.mubr.bf16.gmra.mxu0 %v1328
    %v2384 = vpop.f32.mrf.mxu0
    %v2385 = vadd.f32 %v288, %v2384
    %v2386 = vpop.f32.mrf.mxu0
    %v2387 = vpop.f32.mrf.mxu0
    %v2388 = vadd.f32 %v288, %v2387
    %v2389 = vpop.f32.mrf.mxu0
    %2390 = vdwg.mxu0
    %v2391 = vmax.f32 %v1369, 0.0
    %v2392 = vmax.f32 %v1372, 0.0
    %v2393 = vmax.f32 %v1377, 0.0
    %v2394 = vmax.f32 %v1380, 0.0
    %v2395 = vmax.f32 %v1385, 0.0
    %v2396 = vmax.f32 %v1388, 0.0
    %v2397 = vmax.f32 %v1393, 0.0
    %v2398 = vmax.f32 %v1396, 0.0
    %v2399 = vmax.f32 %v1401, 0.0
    %v2400 = vmax.f32 %v1404, 0.0
    %v2401 = vmax.f32 %v1409, 0.0
    %v2402 = vmax.f32 %v1412, 0.0
    %v2403 = vmax.f32 %v1417, 0.0
    %v2404 = vmax.f32 %v1420, 0.0
    %v2405 = vmax.f32 %v1425, 0.0
    %v2406 = vmax.f32 %v1428, 0.0
    %v2407 = vmax.f32 %v1433, 0.0
    %v2408 = vmax.f32 %v1436, 0.0
    %v2409 = vmax.f32 %v1441, 0.0
    %v2410 = vmax.f32 %v1444, 0.0
    %v2411 = vmax.f32 %v1449, 0.0
    %v2412 = vmax.f32 %v1452, 0.0
    %v2413 = vmax.f32 %v1457, 0.0
    %v2414 = vmax.f32 %v1460, 0.0
    %v2415 = vmax.f32 %v1465, 0.0
    %v2416 = vmax.f32 %v1468, 0.0
    %v2417 = vmax.f32 %v1473, 0.0
    %v2418 = vmax.f32 %v1476, 0.0
    %v2419 = vmax.f32 %v1481, 0.0
    %v2420 = vmax.f32 %v1484, 0.0
    %v2421 = vmax.f32 %v1489, 0.0
    %v2422 = vmax.f32 %v1492, 0.0
    %v2423 = vmax.f32 %v1497, 0.0
    %v2424 = vmax.f32 %v1500, 0.0
    %v2425 = vmax.f32 %v1505, 0.0
    %v2426 = vmax.f32 %v1508, 0.0
    %v2427 = vmax.f32 %v1513, 0.0
    %v2428 = vmax.f32 %v1516, 0.0
    %v2429 = vmax.f32 %v1521, 0.0
    %v2430 = vmax.f32 %v1524, 0.0
    %v2431 = vmax.f32 %v1529, 0.0
    %v2432 = vmax.f32 %v1532, 0.0
    %v2433 = vmax.f32 %v1537, 0.0
    %v2434 = vmax.f32 %v1540, 0.0
    %v2435 = vmax.f32 %v1545, 0.0
    %v2436 = vmax.f32 %v1548, 0.0
    %v2437 = vmax.f32 %v1553, 0.0
    %v2438 = vmax.f32 %v1556, 0.0
    %v2439 = vmax.f32 %v1561, 0.0
    %v2440 = vmax.f32 %v1564, 0.0
    %v2441 = vmax.f32 %v1569, 0.0
    %v2442 = vmax.f32 %v1572, 0.0
    %v2443 = vmax.f32 %v1577, 0.0
    %v2444 = vmax.f32 %v1580, 0.0
    %v2445 = vmax.f32 %v1585, 0.0
    %v2446 = vmax.f32 %v1588, 0.0
    %v2447 = vmax.f32 %v1593, 0.0
    %v2448 = vmax.f32 %v1596, 0.0
    %v2449 = vmax.f32 %v1601, 0.0
    %v2450 = vmax.f32 %v1604, 0.0
    %v2451 = vmax.f32 %v1609, 0.0
    %v2452 = vmax.f32 %v1612, 0.0
    %v2453 = vmax.f32 %v1617, 0.0
    %v2454 = vmax.f32 %v1620, 0.0
    %v2455 = vmax.f32 %v1625, 0.0
    %v2456 = vmax.f32 %v1628, 0.0
    %v2457 = vmax.f32 %v1633, 0.0
    %v2458 = vmax.f32 %v1636, 0.0
    %v2459 = vmax.f32 %v1641, 0.0
    %v2460 = vmax.f32 %v1644, 0.0
    %v2461 = vmax.f32 %v1649, 0.0
    %v2462 = vmax.f32 %v1652, 0.0
    %v2463 = vmax.f32 %v1657, 0.0
    %v2464 = vmax.f32 %v1660, 0.0
    %v2465 = vmax.f32 %v1665, 0.0
    %v2466 = vmax.f32 %v1668, 0.0
    %v2467 = vmax.f32 %v1673, 0.0
    %v2468 = vmax.f32 %v1676, 0.0
    %v2469 = vmax.f32 %v1681, 0.0
    %v2470 = vmax.f32 %v1684, 0.0
    %v2471 = vmax.f32 %v1689, 0.0
    %v2472 = vmax.f32 %v1692, 0.0
    %v2473 = vmax.f32 %v1697, 0.0
    %v2474 = vmax.f32 %v1700, 0.0
    %v2475 = vmax.f32 %v1705, 0.0
    %v2476 = vmax.f32 %v1708, 0.0
    %v2477 = vmax.f32 %v1713, 0.0
    %v2478 = vmax.f32 %v1716, 0.0
    %v2479 = vmax.f32 %v1721, 0.0
    %v2480 = vmax.f32 %v1724, 0.0
    %v2481 = vmax.f32 %v1729, 0.0
    %v2482 = vmax.f32 %v1732, 0.0
    %v2483 = vmax.f32 %v1737, 0.0
    %v2484 = vmax.f32 %v1740, 0.0
    %v2485 = vmax.f32 %v1745, 0.0
    %v2486 = vmax.f32 %v1748, 0.0
    %v2487 = vmax.f32 %v1753, 0.0
    %v2488 = vmax.f32 %v1756, 0.0
    %v2489 = vmax.f32 %v1761, 0.0
    %v2490 = vmax.f32 %v1764, 0.0
    %v2491 = vmax.f32 %v1769, 0.0
    %v2492 = vmax.f32 %v1772, 0.0
    %v2493 = vmax.f32 %v1777, 0.0
    %v2494 = vmax.f32 %v1780, 0.0
    %v2495 = vmax.f32 %v1785, 0.0
    %v2496 = vmax.f32 %v1788, 0.0
    %v2497 = vmax.f32 %v1793, 0.0
    %v2498 = vmax.f32 %v1796, 0.0
    %v2499 = vmax.f32 %v1801, 0.0
    %v2500 = vmax.f32 %v1804, 0.0
    %v2501 = vmax.f32 %v1809, 0.0
    %v2502 = vmax.f32 %v1812, 0.0
    %v2503 = vmax.f32 %v1817, 0.0
    %v2504 = vmax.f32 %v1820, 0.0
    %v2505 = vmax.f32 %v1825, 0.0
    %v2506 = vmax.f32 %v1828, 0.0
    %v2507 = vmax.f32 %v1833, 0.0
    %v2508 = vmax.f32 %v1836, 0.0
    %v2509 = vmax.f32 %v1841, 0.0
    %v2510 = vmax.f32 %v1844, 0.0
    %v2511 = vmax.f32 %v1849, 0.0
    %v2512 = vmax.f32 %v1852, 0.0
    %v2513 = vmax.f32 %v1857, 0.0
    %v2514 = vmax.f32 %v1860, 0.0
    %v2515 = vmax.f32 %v1865, 0.0
    %v2516 = vmax.f32 %v1868, 0.0
    %v2517 = vmax.f32 %v1873, 0.0
    %v2518 = vmax.f32 %v1876, 0.0
    %v2519 = vmax.f32 %v1881, 0.0
    %v2520 = vmax.f32 %v1884, 0.0
    %v2521 = vmax.f32 %v1889, 0.0
    %v2522 = vmax.f32 %v1892, 0.0
    %v2523 = vmax.f32 %v1897, 0.0
    %v2524 = vmax.f32 %v1900, 0.0
    %v2525 = vmax.f32 %v1905, 0.0
    %v2526 = vmax.f32 %v1908, 0.0
    %v2527 = vmax.f32 %v1913, 0.0
    %v2528 = vmax.f32 %v1916, 0.0
    %v2529 = vmax.f32 %v1921, 0.0
    %v2530 = vmax.f32 %v1924, 0.0
    %v2531 = vmax.f32 %v1929, 0.0
    %v2532 = vmax.f32 %v1932, 0.0
    %v2533 = vmax.f32 %v1937, 0.0
    %v2534 = vmax.f32 %v1940, 0.0
    %v2535 = vmax.f32 %v1945, 0.0
    %v2536 = vmax.f32 %v1948, 0.0
    %v2537 = vmax.f32 %v1953, 0.0
    %v2538 = vmax.f32 %v1956, 0.0
    %v2539 = vmax.f32 %v1961, 0.0
    %v2540 = vmax.f32 %v1964, 0.0
    %v2541 = vmax.f32 %v1969, 0.0
    %v2542 = vmax.f32 %v1972, 0.0
    %v2543 = vmax.f32 %v1977, 0.0
    %v2544 = vmax.f32 %v1980, 0.0
    %v2545 = vmax.f32 %v1985, 0.0
    %v2546 = vmax.f32 %v1988, 0.0
    %v2547 = vmax.f32 %v1993, 0.0
    %v2548 = vmax.f32 %v1996, 0.0
    %v2549 = vmax.f32 %v2001, 0.0
    %v2550 = vmax.f32 %v2004, 0.0
    %v2551 = vmax.f32 %v2009, 0.0
    %v2552 = vmax.f32 %v2012, 0.0
    %v2553 = vmax.f32 %v2017, 0.0
    %v2554 = vmax.f32 %v2020, 0.0
    %v2555 = vmax.f32 %v2025, 0.0
    %v2556 = vmax.f32 %v2028, 0.0
    %v2557 = vmax.f32 %v2033, 0.0
    %v2558 = vmax.f32 %v2036, 0.0
    %v2559 = vmax.f32 %v2041, 0.0
    %v2560 = vmax.f32 %v2044, 0.0
    %v2561 = vmax.f32 %v2049, 0.0
    %v2562 = vmax.f32 %v2052, 0.0
    %v2563 = vmax.f32 %v2057, 0.0
    %v2564 = vmax.f32 %v2060, 0.0
    %v2565 = vmax.f32 %v2065, 0.0
    %v2566 = vmax.f32 %v2068, 0.0
    %v2567 = vmax.f32 %v2073, 0.0
    %v2568 = vmax.f32 %v2076, 0.0
    %v2569 = vmax.f32 %v2081, 0.0
    %v2570 = vmax.f32 %v2084, 0.0
    %v2571 = vmax.f32 %v2089, 0.0
    %v2572 = vmax.f32 %v2092, 0.0
    %v2573 = vmax.f32 %v2097, 0.0
    %v2574 = vmax.f32 %v2100, 0.0
    %v2575 = vmax.f32 %v2105, 0.0
    %v2576 = vmax.f32 %v2108, 0.0
    %v2577 = vmax.f32 %v2113, 0.0
    %v2578 = vmax.f32 %v2116, 0.0
    %v2579 = vmax.f32 %v2121, 0.0
    %v2580 = vmax.f32 %v2124, 0.0
    %v2581 = vmax.f32 %v2129, 0.0
    %v2582 = vmax.f32 %v2132, 0.0
    %v2583 = vmax.f32 %v2137, 0.0
    %v2584 = vmax.f32 %v2140, 0.0
    %v2585 = vmax.f32 %v2145, 0.0
    %v2586 = vmax.f32 %v2148, 0.0
    %v2587 = vmax.f32 %v2153, 0.0
    %v2588 = vmax.f32 %v2156, 0.0
    %v2589 = vmax.f32 %v2161, 0.0
    %v2590 = vmax.f32 %v2164, 0.0
    %v2591 = vmax.f32 %v2169, 0.0
    %v2592 = vmax.f32 %v2172, 0.0
    %v2593 = vmax.f32 %v2177, 0.0
    %v2594 = vmax.f32 %v2180, 0.0
    %v2595 = vmax.f32 %v2185, 0.0
    %v2596 = vmax.f32 %v2188, 0.0
    %v2597 = vmax.f32 %v2193, 0.0
    %v2598 = vmax.f32 %v2196, 0.0
    %v2599 = vmax.f32 %v2201, 0.0
    %v2600 = vmax.f32 %v2204, 0.0
    %v2601 = vmax.f32 %v2209, 0.0
    %v2602 = vmax.f32 %v2212, 0.0
    %v2603 = vmax.f32 %v2217, 0.0
    %v2604 = vmax.f32 %v2220, 0.0
    %v2605 = vmax.f32 %v2225, 0.0
    %v2606 = vmax.f32 %v2228, 0.0
    %v2607 = vmax.f32 %v2233, 0.0
    %v2608 = vmax.f32 %v2236, 0.0
    %v2609 = vmax.f32 %v2241, 0.0
    %v2610 = vmax.f32 %v2244, 0.0
    %v2611 = vmax.f32 %v2249, 0.0
    %v2612 = vmax.f32 %v2252, 0.0
    %v2613 = vmax.f32 %v2257, 0.0
    %v2614 = vmax.f32 %v2260, 0.0
    %v2615 = vmax.f32 %v2265, 0.0
    %v2616 = vmax.f32 %v2268, 0.0
    %v2617 = vmax.f32 %v2273, 0.0
    %v2618 = vmax.f32 %v2276, 0.0
    %v2619 = vmax.f32 %v2281, 0.0
    %v2620 = vmax.f32 %v2284, 0.0
    %v2621 = vmax.f32 %v2289, 0.0
    %v2622 = vmax.f32 %v2292, 0.0
    %v2623 = vmax.f32 %v2297, 0.0
    %v2624 = vmax.f32 %v2300, 0.0
    %v2625 = vmax.f32 %v2305, 0.0
    %v2626 = vmax.f32 %v2308, 0.0
    %v2627 = vmax.f32 %v2313, 0.0
    %v2628 = vmax.f32 %v2316, 0.0
    %v2629 = vmax.f32 %v2321, 0.0
    %v2630 = vmax.f32 %v2324, 0.0
    %v2631 = vmax.f32 %v2329, 0.0
    %v2632 = vmax.f32 %v2332, 0.0
    %v2633 = vmax.f32 %v2337, 0.0
    %v2634 = vmax.f32 %v2340, 0.0
    %v2635 = vmax.f32 %v2345, 0.0
    %v2636 = vmax.f32 %v2348, 0.0
    %v2637 = vmax.f32 %v2353, 0.0
    %v2638 = vmax.f32 %v2356, 0.0
    %v2639 = vmax.f32 %v2361, 0.0
    %v2640 = vmax.f32 %v2364, 0.0
    %v2641 = vmax.f32 %v2369, 0.0
    %v2642 = vmax.f32 %v2372, 0.0
    %v2643 = vmax.f32 %v2377, 0.0
    %v2644 = vmax.f32 %v2380, 0.0
    %v2645 = vmax.f32 %v2385, 0.0
    %v2646 = vmax.f32 %v2388, 0.0
    %v2647 = vadd.f32 %v2391, %v2392
    %v2648 = vadd.f32 %v2647, %v2393
    %v2649 = vadd.f32 %v2648, %v2394
    %v2650 = vadd.f32 %v2649, %v2395
    %v2651 = vadd.f32 %v2650, %v2396
    %v2652 = vadd.f32 %v2651, %v2397
    %v2653 = vadd.f32 %v2652, %v2398
    %v2654 = vadd.f32 %v2653, %v2399
    %v2655 = vadd.f32 %v2654, %v2400
    %v2656 = vadd.f32 %v2655, %v2401
    %v2657 = vadd.f32 %v2656, %v2402
    %v2658 = vadd.f32 %v2657, %v2403
    %v2659 = vadd.f32 %v2658, %v2404
    %v2660 = vadd.f32 %v2659, %v2405
    %v2661 = vadd.f32 %v2660, %v2406
    %v2662 = vadd.f32 %v2661, %v2407
    %v2663 = vadd.f32 %v2662, %v2408
    %v2664 = vadd.f32 %v2663, %v2409
    %v2665 = vadd.f32 %v2664, %v2410
    %v2666 = vadd.f32 %v2665, %v2411
    %v2667 = vadd.f32 %v2666, %v2412
    %v2668 = vadd.f32 %v2667, %v2413
    %v2669 = vadd.f32 %v2668, %v2414
    %v2670 = vadd.f32 %v2669, %v2415
    %v2671 = vadd.f32 %v2670, %v2416
    %v2672 = vadd.f32 %v2671, %v2417
    %v2673 = vadd.f32 %v2672, %v2418
    %v2674 = vadd.f32 %v2673, %v2419
    %v2675 = vadd.f32 %v2674, %v2420
    %v2676 = vadd.f32 %v2675, %v2421
    %v2677 = vadd.f32 %v2676, %v2422
    %v2678 = vrot.slane %v2677, 4
    %v2679 = vadd.f32 %v2677, %v2678
    %v2680 = vrot.slane %v2679, 2
    %v2681 = vadd.f32 %v2679, %v2680
    %v2682 = vrot.slane %v2681, 1
    %v2683 = vadd.f32 %v2681, %v2682
    %v2684 = vadd.f32 %v2423, %v2424
    %v2685 = vadd.f32 %v2684, %v2425
    %v2686 = vadd.f32 %v2685, %v2426
    %v2687 = vadd.f32 %v2686, %v2427
    %v2688 = vadd.f32 %v2687, %v2428
    %v2689 = vadd.f32 %v2688, %v2429
    %v2690 = vadd.f32 %v2689, %v2430
    %v2691 = vadd.f32 %v2690, %v2431
    %v2692 = vadd.f32 %v2691, %v2432
    %v2693 = vadd.f32 %v2692, %v2433
    %v2694 = vadd.f32 %v2693, %v2434
    %v2695 = vadd.f32 %v2694, %v2435
    %v2696 = vadd.f32 %v2695, %v2436
    %v2697 = vadd.f32 %v2696, %v2437
    %v2698 = vadd.f32 %v2697, %v2438
    %v2699 = vadd.f32 %v2698, %v2439
    %v2700 = vadd.f32 %v2699, %v2440
    %v2701 = vadd.f32 %v2700, %v2441
    %v2702 = vadd.f32 %v2701, %v2442
    %v2703 = vadd.f32 %v2702, %v2443
    %v2704 = vadd.f32 %v2703, %v2444
    %v2705 = vadd.f32 %v2704, %v2445
    %v2706 = vadd.f32 %v2705, %v2446
    %v2707 = vadd.f32 %v2706, %v2447
    %v2708 = vadd.f32 %v2707, %v2448
    %v2709 = vadd.f32 %v2708, %v2449
    %v2710 = vadd.f32 %v2709, %v2450
    %v2711 = vadd.f32 %v2710, %v2451
    %v2712 = vadd.f32 %v2711, %v2452
    %v2713 = vadd.f32 %v2712, %v2453
    %v2714 = vadd.f32 %v2713, %v2454
    %v2715 = vrot.slane %v2714, 4
    %v2716 = vadd.f32 %v2714, %v2715
    %v2717 = vrot.slane %v2716, 2
    %v2718 = vadd.f32 %v2716, %v2717
    %v2719 = vrot.slane %v2718, 1
    %v2720 = vadd.f32 %v2718, %v2719
    %v2721 = vadd.f32 %v2455, %v2456
    %v2722 = vadd.f32 %v2721, %v2457
    %v2723 = vadd.f32 %v2722, %v2458
    %v2724 = vadd.f32 %v2723, %v2459
    %v2725 = vadd.f32 %v2724, %v2460
    %v2726 = vadd.f32 %v2725, %v2461
    %v2727 = vadd.f32 %v2726, %v2462
    %v2728 = vadd.f32 %v2727, %v2463
    %v2729 = vadd.f32 %v2728, %v2464
    %v2730 = vadd.f32 %v2729, %v2465
    %v2731 = vadd.f32 %v2730, %v2466
    %v2732 = vadd.f32 %v2731, %v2467
    %v2733 = vadd.f32 %v2732, %v2468
    %v2734 = vadd.f32 %v2733, %v2469
    %v2735 = vadd.f32 %v2734, %v2470
    %v2736 = vadd.f32 %v2735, %v2471
    %v2737 = vadd.f32 %v2736, %v2472
    %v2738 = vadd.f32 %v2737, %v2473
    %v2739 = vadd.f32 %v2738, %v2474
    %v2740 = vadd.f32 %v2739, %v2475
    %v2741 = vadd.f32 %v2740, %v2476
    %v2742 = vadd.f32 %v2741, %v2477
    %v2743 = vadd.f32 %v2742, %v2478
    %v2744 = vadd.f32 %v2743, %v2479
    %v2745 = vadd.f32 %v2744, %v2480
    %v2746 = vadd.f32 %v2745, %v2481
    %v2747 = vadd.f32 %v2746, %v2482
    %v2748 = vadd.f32 %v2747, %v2483
    %v2749 = vadd.f32 %v2748, %v2484
    %v2750 = vadd.f32 %v2749, %v2485
    %v2751 = vadd.f32 %v2750, %v2486
    %v2752 = vrot.slane %v2751, 4
    %v2753 = vadd.f32 %v2751, %v2752
    %v2754 = vrot.slane %v2753, 2
    %v2755 = vadd.f32 %v2753, %v2754
    %v2756 = vrot.slane %v2755, 1
    %v2757 = vadd.f32 %v2755, %v2756
    %v2758 = vadd.f32 %v2487, %v2488
    %v2759 = vadd.f32 %v2758, %v2489
    %v2760 = vadd.f32 %v2759, %v2490
    %v2761 = vadd.f32 %v2760, %v2491
    %v2762 = vadd.f32 %v2761, %v2492
    %v2763 = vadd.f32 %v2762, %v2493
    %v2764 = vadd.f32 %v2763, %v2494
    %v2765 = vadd.f32 %v2764, %v2495
    %v2766 = vadd.f32 %v2765, %v2496
    %v2767 = vadd.f32 %v2766, %v2497
    %v2768 = vadd.f32 %v2767, %v2498
    %v2769 = vadd.f32 %v2768, %v2499
    %v2770 = vadd.f32 %v2769, %v2500
    %v2771 = vadd.f32 %v2770, %v2501
    %v2772 = vadd.f32 %v2771, %v2502
    %v2773 = vadd.f32 %v2772, %v2503
    %v2774 = vadd.f32 %v2773, %v2504
    %v2775 = vadd.f32 %v2774, %v2505
    %v2776 = vadd.f32 %v2775, %v2506
    %v2777 = vadd.f32 %v2776, %v2507
    %v2778 = vadd.f32 %v2777, %v2508
    %v2779 = vadd.f32 %v2778, %v2509
    %v2780 = vadd.f32 %v2779, %v2510
    %v2781 = vadd.f32 %v2780, %v2511
    %v2782 = vadd.f32 %v2781, %v2512
    %v2783 = vadd.f32 %v2782, %v2513
    %v2784 = vadd.f32 %v2783, %v2514
    %v2785 = vadd.f32 %v2784, %v2515
    %v2786 = vadd.f32 %v2785, %v2516
    %v2787 = vadd.f32 %v2786, %v2517
    %v2788 = vadd.f32 %v2787, %v2518
    %v2789 = vrot.slane %v2788, 4
    %v2790 = vadd.f32 %v2788, %v2789
    %v2791 = vrot.slane %v2790, 2
    %v2792 = vadd.f32 %v2790, %v2791
    %v2793 = vrot.slane %v2792, 1
    %v2794 = vadd.f32 %v2792, %v2793
    %v2795 = vadd.f32 %v2519, %v2520
    %v2796 = vadd.f32 %v2795, %v2521
    %v2797 = vadd.f32 %v2796, %v2522
    %v2798 = vadd.f32 %v2797, %v2523
    %v2799 = vadd.f32 %v2798, %v2524
    %v2800 = vadd.f32 %v2799, %v2525
    %v2801 = vadd.f32 %v2800, %v2526
    %v2802 = vadd.f32 %v2801, %v2527
    %v2803 = vadd.f32 %v2802, %v2528
    %v2804 = vadd.f32 %v2803, %v2529
    %v2805 = vadd.f32 %v2804, %v2530
    %v2806 = vadd.f32 %v2805, %v2531
    %v2807 = vadd.f32 %v2806, %v2532
    %v2808 = vadd.f32 %v2807, %v2533
    %v2809 = vadd.f32 %v2808, %v2534
    %v2810 = vadd.f32 %v2809, %v2535
    %v2811 = vadd.f32 %v2810, %v2536
    %v2812 = vadd.f32 %v2811, %v2537
    %v2813 = vadd.f32 %v2812, %v2538
    %v2814 = vadd.f32 %v2813, %v2539
    %v2815 = vadd.f32 %v2814, %v2540
    %v2816 = vadd.f32 %v2815, %v2541
    %v2817 = vadd.f32 %v2816, %v2542
    %v2818 = vadd.f32 %v2817, %v2543
    %v2819 = vadd.f32 %v2818, %v2544
    %v2820 = vadd.f32 %v2819, %v2545
    %v2821 = vadd.f32 %v2820, %v2546
    %v2822 = vadd.f32 %v2821, %v2547
    %v2823 = vadd.f32 %v2822, %v2548
    %v2824 = vadd.f32 %v2823, %v2549
    %v2825 = vadd.f32 %v2824, %v2550
    %v2826 = vrot.slane %v2825, 4
    %v2827 = vadd.f32 %v2825, %v2826
    %v2828 = vrot.slane %v2827, 2
    %v2829 = vadd.f32 %v2827, %v2828
    %v2830 = vrot.slane %v2829, 1
    %v2831 = vadd.f32 %v2829, %v2830
    %v2832 = vadd.f32 %v2551, %v2552
    %v2833 = vadd.f32 %v2832, %v2553
    %v2834 = vadd.f32 %v2833, %v2554
    %v2835 = vadd.f32 %v2834, %v2555
    %v2836 = vadd.f32 %v2835, %v2556
    %v2837 = vadd.f32 %v2836, %v2557
    %v2838 = vadd.f32 %v2837, %v2558
    %v2839 = vadd.f32 %v2838, %v2559
    %v2840 = vadd.f32 %v2839, %v2560
    %v2841 = vadd.f32 %v2840, %v2561
    %v2842 = vadd.f32 %v2841, %v2562
    %v2843 = vadd.f32 %v2842, %v2563
    %v2844 = vadd.f32 %v2843, %v2564
    %v2845 = vadd.f32 %v2844, %v2565
    %v2846 = vadd.f32 %v2845, %v2566
    %v2847 = vadd.f32 %v2846, %v2567
    %v2848 = vadd.f32 %v2847, %v2568
    %v2849 = vadd.f32 %v2848, %v2569
    %v2850 = vadd.f32 %v2849, %v2570
    %v2851 = vadd.f32 %v2850, %v2571
    %v2852 = vadd.f32 %v2851, %v2572
    %v2853 = vadd.f32 %v2852, %v2573
    %v2854 = vadd.f32 %v2853, %v2574
    %v2855 = vadd.f32 %v2854, %v2575
    %v2856 = vadd.f32 %v2855, %v2576
    %v2857 = vadd.f32 %v2856, %v2577
    %v2858 = vadd.f32 %v2857, %v2578
    %v2859 = vadd.f32 %v2858, %v2579
    %v2860 = vadd.f32 %v2859, %v2580
    %v2861 = vadd.f32 %v2860, %v2581
    %v2862 = vadd.f32 %v2861, %v2582
    %v2863 = vrot.slane %v2862, 4
    %v2864 = vadd.f32 %v2862, %v2863
    %v2865 = vrot.slane %v2864, 2
    %v2866 = vadd.f32 %v2864, %v2865
    %v2867 = vrot.slane %v2866, 1
    %v2868 = vadd.f32 %v2866, %v2867
    %v2869 = vadd.f32 %v2583, %v2584
    %v2870 = vadd.f32 %v2869, %v2585
    %v2871 = vadd.f32 %v2870, %v2586
    %v2872 = vadd.f32 %v2871, %v2587
    %v2873 = vadd.f32 %v2872, %v2588
    %v2874 = vadd.f32 %v2873, %v2589
    %v2875 = vadd.f32 %v2874, %v2590
    %v2876 = vadd.f32 %v2875, %v2591
    %v2877 = vadd.f32 %v2876, %v2592
    %v2878 = vadd.f32 %v2877, %v2593
    %v2879 = vadd.f32 %v2878, %v2594
    %v2880 = vadd.f32 %v2879, %v2595
    %v2881 = vadd.f32 %v2880, %v2596
    %v2882 = vadd.f32 %v2881, %v2597
    %v2883 = vadd.f32 %v2882, %v2598
    %v2884 = vadd.f32 %v2883, %v2599
    %v2885 = vadd.f32 %v2884, %v2600
    %v2886 = vadd.f32 %v2885, %v2601
    %v2887 = vadd.f32 %v2886, %v2602
    %v2888 = vadd.f32 %v2887, %v2603
    %v2889 = vadd.f32 %v2888, %v2604
    %v2890 = vadd.f32 %v2889, %v2605
    %v2891 = vadd.f32 %v2890, %v2606
    %v2892 = vadd.f32 %v2891, %v2607
    %v2893 = vadd.f32 %v2892, %v2608
    %v2894 = vadd.f32 %v2893, %v2609
    %v2895 = vadd.f32 %v2894, %v2610
    %v2896 = vadd.f32 %v2895, %v2611
    %v2897 = vadd.f32 %v2896, %v2612
    %v2898 = vadd.f32 %v2897, %v2613
    %v2899 = vadd.f32 %v2898, %v2614
    %v2900 = vrot.slane %v2899, 4
    %v2901 = vadd.f32 %v2899, %v2900
    %v2902 = vrot.slane %v2901, 2
    %v2903 = vadd.f32 %v2901, %v2902
    %v2904 = vrot.slane %v2903, 1
    %v2905 = vadd.f32 %v2903, %v2904
    %v2906 = vadd.f32 %v2615, %v2616
    %v2907 = vadd.f32 %v2906, %v2617
    %v2908 = vadd.f32 %v2907, %v2618
    %v2909 = vadd.f32 %v2908, %v2619
    %v2910 = vadd.f32 %v2909, %v2620
    %v2911 = vadd.f32 %v2910, %v2621
    %v2912 = vadd.f32 %v2911, %v2622
    %v2913 = vadd.f32 %v2912, %v2623
    %v2914 = vadd.f32 %v2913, %v2624
    %v2915 = vadd.f32 %v2914, %v2625
    %v2916 = vadd.f32 %v2915, %v2626
    %v2917 = vadd.f32 %v2916, %v2627
    %v2918 = vadd.f32 %v2917, %v2628
    %v2919 = vadd.f32 %v2918, %v2629
    %v2920 = vadd.f32 %v2919, %v2630
    %v2921 = vadd.f32 %v2920, %v2631
    %v2922 = vadd.f32 %v2921, %v2632
    %v2923 = vadd.f32 %v2922, %v2633
    %v2924 = vadd.f32 %v2923, %v2634
    %v2925 = vadd.f32 %v2924, %v2635
    %v2926 = vadd.f32 %v2925, %v2636
    %v2927 = vadd.f32 %v2926, %v2637
    %v2928 = vadd.f32 %v2927, %v2638
    %v2929 = vadd.f32 %v2928, %v2639
    %v2930 = vadd.f32 %v2929, %v2640
    %v2931 = vadd.f32 %v2930, %v2641
    %v2932 = vadd.f32 %v2931, %v2642
    %v2933 = vadd.f32 %v2932, %v2643
    %v2934 = vadd.f32 %v2933, %v2644
    %v2935 = vadd.f32 %v2934, %v2645
    %v2936 = vadd.f32 %v2935, %v2646
    %v2937 = vrot.slane %v2936, 4
    %v2938 = vadd.f32 %v2936, %v2937
    %v2939 = vrot.slane %v2938, 2
    %v2940 = vadd.f32 %v2938, %v2939
    %v2941 = vrot.slane %v2940, 1
    %v2942 = vadd.f32 %v2940, %v2941
    %v2943 = vmul.f32 %v2683, 0.00390625
    %v2944 = vmul.f32 %v2720, 0.00390625
    %v2945 = vmul.f32 %v2757, 0.00390625
    %v2946 = vmul.f32 %v2794, 0.00390625
    %v2947 = vmul.f32 %v2831, 0.00390625
    %v2948 = vmul.f32 %v2868, 0.00390625
    %v2949 = vmul.f32 %v2905, 0.00390625
    %v2950 = vmul.f32 %v2942, 0.00390625
    %v2951 = vpack.c.bf16 %v2943, %v2943
    %v2952 = vpack.c.bf16 %v2944, %v2944
    %v2953 = vpack.c.bf16 %v2945, %v2945
    %v2954 = vpack.c.bf16 %v2946, %v2946
    %v2955 = vpack.c.bf16 %v2947, %v2947
    %v2956 = vpack.c.bf16 %v2948, %v2948
    %v2957 = vpack.c.bf16 %v2949, %v2949
    %v2958 = vpack.c.bf16 %v2950, %v2950
    %v2959 = vld [vmem:[%s3] sm:$0xf]
    %v2960 = vld [vmem:[%s3 + $0x4] sm:$0xf]
    %v2961 = vld [vmem:[%s3 + $0x8] sm:$0xf]
    %v2962 = vld [vmem:[%s3 + $0xc] sm:$0xf]
    %v2963 = vld [vmem:[%s3 + $0x10] sm:$0xf]
    %v2964 = vld [vmem:[%s3 + $0x14] sm:$0xf]
    %v2965 = vld [vmem:[%s3 + $0x18] sm:$0xf]
    %v2966 = vld [vmem:[%s3 + $0x1c] sm:$0xf]
    %v2967 = vld [vmem:[%s3 + $0x20] sm:$0xf]
    %v2968 = vld [vmem:[%s3 + $0x24] sm:$0xf]
    %v2969 = vld [vmem:[%s3 + $0x28] sm:$0xf]
    %v2970 = vld [vmem:[%s3 + $0x2c] sm:$0xf]
    %v2971 = vld [vmem:[%s3 + $0x30] sm:$0xf]
    %v2972 = vld [vmem:[%s3 + $0x34] sm:$0xf]
    %v2973 = vld [vmem:[%s3 + $0x38] sm:$0xf]
    %v2974 = vld [vmem:[%s3 + $0x3c] sm:$0xf]
    %v2975 = vld [vmem:[%s4] sm:$0x1]
    %v2977 = vlaneseq
    %v2978 = vshrl.u32 %v2977, 7
    %v2979 = vsub.s32 0, %v2978
    %v2980 = vrot.slane %v2975, %v2979
    %v2990 = vunpack.c.l.b16 %v2951
    %v2991 = vunpack.c.l.b16 %v2952
    %v2992 = vunpack.c.l.b16 %v2953
    %v2993 = vunpack.c.l.b16 %v2954
    %v2994 = vunpack.c.l.b16 %v2955
    %v2995 = vunpack.c.l.b16 %v2956
    %v2996 = vunpack.c.l.b16 %v2957
    %v2997 = vunpack.c.l.b16 %v2958
    %vm2998 = vcmask 1041409
    %v2999 = vsel %vm2998, %v2991, %v2990
    %vm3000 = vcmask 1042434
    %v3001 = vsel %vm3000, %v2992, %v2999
    %vm3002 = vcmask 1043459
    %v3003 = vsel %vm3002, %v2993, %v3001
    %vm3004 = vcmask 1044484
    %v3005 = vsel %vm3004, %v2994, %v3003
    %vm3006 = vcmask 1045509
    %v3007 = vsel %vm3006, %v2995, %v3005
    %vm3008 = vcmask 1046534
    %v3009 = vsel %vm3008, %v2996, %v3007
    %vm3010 = vcmask 1047559
    %v3011 = vsel %vm3010, %v2997, %v3009
    %v3012 = vpack.c.b16 %v3011, %v3011
    %v3030 = vunpack.c.l.b16 %v2959
    %v3031 = vunpack.c.l.b16 %v2960
    %v3032 = vunpack.c.l.b16 %v2961
    %v3033 = vunpack.c.l.b16 %v2962
    %v3034 = vunpack.c.l.b16 %v2963
    %v3035 = vunpack.c.l.b16 %v2964
    %v3036 = vunpack.c.l.b16 %v2965
    %v3037 = vunpack.c.l.b16 %v2966
    %v3038 = vunpack.c.l.b16 %v2967
    %v3039 = vunpack.c.l.b16 %v2968
    %v3040 = vunpack.c.l.b16 %v2969
    %v3041 = vunpack.c.l.b16 %v2970
    %v3042 = vunpack.c.l.b16 %v2971
    %v3043 = vunpack.c.l.b16 %v2972
    %v3044 = vunpack.c.l.b16 %v2973
    %v3045 = vunpack.c.l.b16 %v2974
    %v3046 = vpack.c.b16 %v3031, %v3030
    %v3047 = vpack.c.b16 %v3033, %v3032
    %v3048 = vpack.c.b16 %v3035, %v3034
    %v3049 = vpack.c.b16 %v3037, %v3036
    %v3050 = vpack.c.b16 %v3039, %v3038
    %v3051 = vpack.c.b16 %v3041, %v3040
    %v3052 = vpack.c.b16 %v3043, %v3042
    %v3053 = vpack.c.b16 %v3045, %v3044
    %3062 = vmatprep.subr.bf16.mxu0 0
    %3063 = vmatpush1.bf16.msra.mxu0 %v3053
    %3064 = vmatprep.subr.bf16.mxu0 0
    %3065 = vmatpush1.bf16.msra.mxu0 %v3052
    %3066 = vmatprep.subr.bf16.mxu0 0
    %3067 = vmatpush1.bf16.msra.mxu0 %v3051
    %3068 = vmatprep.subr.bf16.mxu0 0
    %3069 = vmatpush1.bf16.msra.mxu0 %v3050
    %3070 = vmatprep.subr.bf16.mxu0 0
    %3071 = vmatpush1.bf16.msra.mxu0 %v3049
    %3072 = vmatprep.subr.bf16.mxu0 0
    %3073 = vmatpush1.bf16.msra.mxu0 %v3048
    %3074 = vmatprep.subr.bf16.mxu0 0
    %3075 = vmatpush1.bf16.msra.mxu0 %v3047
    %3076 = vmatprep.subr.bf16.mxu0 0
    %3077 = vmatpush1.bf16.msra.mxu0 %v3046
    %3078 = vmatprep.subr.bf16.mxu0 0
    %3079 = vmatpush2.bf16.msra.mxu0 0
    %3080 = vmatprep.subr.bf16.mxu0 0
    %3081 = vmatpush2.bf16.msra.mxu0 0
    %3082 = vmatprep.subr.bf16.mxu0 0
    %3083 = vmatpush2.bf16.msra.mxu0 0
    %3084 = vmatprep.subr.bf16.mxu0 0
    %3085 = vmatpush2.bf16.msra.mxu0 0
    %3086 = vmatprep.subr.bf16.mxu0 0
    %3087 = vmatpush2.bf16.msra.mxu0 0
    %3088 = vmatprep.subr.bf16.mxu0 0
    %3089 = vmatpush2.bf16.msra.mxu0 0
    %3090 = vmatprep.subr.bf16.mxu0 0
    %3091 = vmatpush2.bf16.msra.mxu0 0
    %3092 = vmatprep.subr.bf16.mxu0 0
    %3093 = vmatpush2.bf16.msra.mxu0 0
    %3094 = vmatprep.mubr.bf16.mxu0 0
    %3095 = vmatmul.mubr.bf16.gmra.mxu0 %v3012
    %v3096 = vpop.f32.mrf.mxu0
    %v3097 = vadd.f32 %v2980, %v3096
    %v3098 = vpop.f32.mrf.mxu0
    %v3099 = vpop.f32.mrf.mxu0
    %v3100 = vpop.f32.mrf.mxu0
    %3101 = vdwg.mxu0
    %3102 = vst [vmem:[#allocation2] sm:$0xff] %v3097
    // Predicated region
    $region22: #{tpu_custom_call.1} parent=1 // pred_check
      _
    $region23: #{tpu_custom_call.1} parent=1 // pred_check_branch
      %3104 = sbr.rel (0) target = $region25
    $region24: #{tpu_custom_call.1} parent=1 // pred_region
      %s3106 = ssub.s32 128, 128
      %3107 = vsyncadd [#allocation3], %s3106
      %s3109 = sshll.u32 [#allocation2], 4
      %s3110 = int_to_ptr.vmem [resolvable:$true] %s3109
      %3112 = dma.vmem_to_hbm [thread:$0]  %s3110, 128, %s5, [#allocation3]
    $region25: #{tpu_custom_call.1} parent=1 // pred_fallthru
      _
    // Predicated region
    $region26: #{tpu_custom_call.1} parent=1 // pred_check
      _
    $region27: #{tpu_custom_call.1} parent=1 // pred_check_branch
      %3114 = sbr.rel (0) target = $region29
    $region28: #{tpu_custom_call.1} parent=1 // pred_region
      %3115 = dma.done [#allocation3], 128
    $region29: #{tpu_custom_call.1} parent=1 // pred_fallthru
      _
    %3116 = vsyncpa [#allocation3], 1

</llo_original>
